<compile_context>
chip_gen: v7x
topology: tpu7x:2x2x1
jax: 0.10.0
libtpu: 0.0.40
codegen_flags: <defaults>
</compile_context>

<pallas_src>
import jax
import jax.numpy as jnp
from jax import lax
from jax.experimental import pallas as pl
from jax.experimental.pallas import tpu as pltpu

LN_EPS = 1e-5   # PyTorch LayerNorm default


def _round_up(x, m):
    return ((x + m - 1) // m) * m


def _layernorm(h):
    # LayerNorm over last dim, elementwise_affine=False (f32 math)
    mu = jnp.mean(h, axis=-1, keepdims=True)
    var = jnp.mean((h - mu) ** 2, axis=-1, keepdims=True)
    return (h - mu) * lax.rsqrt(var + LN_EPS)


def _mlp(x, w1, b1, w2, b2, w3, b3):
    # MXU operands in the weights' dtype (bf16 fast path / f32 parity path);
    # accumulation and all VPU/EUP math stay f32.
    cd = w1.dtype
    h = jnp.dot(x.astype(cd), w1, preferred_element_type=jnp.float32) + b1
    h = jnp.maximum(_layernorm(h), 0.0)
    h = jnp.dot(h.astype(cd), w2, preferred_element_type=jnp.float32) + b2
    h = jnp.maximum(_layernorm(h), 0.0)
    return jnp.dot(h.astype(cd), w3, preferred_element_type=jnp.float32) + b3


def latent_additive_kernel(
    x_ref, p_ref,
    ge_w1, ge_b1, ge_w2, ge_b2, ge_w3, ge_b3,
    pe_w1, pe_b1, pe_w2, pe_b2, pe_w3, pe_b3,
    de_w1, de_b1, de_w2, de_b2, de_w3, de_b3,
    o_ref,
):
    latent_control = _mlp(x_ref[...], ge_w1[...], ge_b1[...], ge_w2[...], ge_b2[...],
                          ge_w3[...], ge_b3[...])
    latent_pert = _mlp(p_ref[...], pe_w1[...], pe_b1[...], pe_w2[...], pe_b2[...],
                       pe_w3[...], pe_b3[...])
    y = _mlp(latent_control + latent_pert,
             de_w1[...], de_b1[...], de_w2[...], de_b2[...], de_w3[...], de_b3[...])
    # softplus(y) == logaddexp(y, 0) == max(y,0) + log1p(exp(-|y|))  (f32 math)
    sp = jnp.maximum(y, 0.0) + jnp.log1p(jnp.exp(-jnp.abs(y)))
    o_ref[...] = sp.astype(o_ref.dtype)


def init_params(key, n_genes, n_perts, hidden=128, latent=32):
    """Deterministic parameter init. Weights stored as (in, out); biases as (1, out)."""
    def mlp_params(key, d_in, d_h, d_out):
        ks = jax.random.split(key, 6)
        scale = lambda d: 1.0 / jnp.sqrt(jnp.float32(d))
        return dict(
            w1=jax.random.uniform(ks[0], (d_in, d_h), jnp.float32, -scale(d_in), scale(d_in)),
            b1=jax.random.uniform(ks[1], (1, d_h), jnp.float32, -scale(d_in), scale(d_in)),
            w2=jax.random.uniform(ks[2], (d_h, d_h), jnp.float32, -scale(d_h), scale(d_h)),
            b2=jax.random.uniform(ks[3], (1, d_h), jnp.float32, -scale(d_h), scale(d_h)),
            w3=jax.random.uniform(ks[4], (d_h, d_out), jnp.float32, -scale(d_h), scale(d_h)),
            b3=jax.random.uniform(ks[5], (1, d_out), jnp.float32, -scale(d_h), scale(d_h)),
        )

    k_ge, k_pe, k_de = jax.random.split(key, 3)
    return dict(
        gene_encoder=mlp_params(k_ge, n_genes, hidden, latent),
        pert_encoder=mlp_params(k_pe, n_perts, hidden, latent),
        decoder=mlp_params(k_de, latent, hidden, n_genes),
    )


def prepare_params(params, compute_dtype=jnp.bfloat16):
    """One-time cast of the weights to the MXU dtype (hoisted out of the forward).

    Returns a flat tuple (gene_encoder, pert_encoder, decoder) x (w1,b1,w2,b2,w3,b3).
    Biases stay f32 (they are added to the f32 accumulator).
    """
    cd = jnp.dtype(compute_dtype)

    def prep(p):
        return [p["w1"].astype(cd), p["b1"].astype(jnp.float32),
                p["w2"].astype(cd), p["b2"].astype(jnp.float32),
                p["w3"].astype(cd), p["b3"].astype(jnp.float32)]

    return tuple(prep(params["gene_encoder"]) + prep(params["pert_encoder"])
                 + prep(params["decoder"]))


def latent_additive_forward(control_input, perturbation, params, *, tb=None,
                            compute_dtype=jnp.bfloat16, out_dtype=None):
    """Fused LatentAdditive forward.

    params: either the raw param dict (cast per call) or a prepare_params() tuple
      (preferred — hoists the weight cast out of the per-call path).
    compute_dtype: MXU operand dtype (bf16 default; jnp.float32 for exact parity).
    out_dtype: output dtype; defaults to compute_dtype (bf16 output halves writeback).
    """
    weights = params if isinstance(params, tuple) else prepare_params(params, compute_dtype)
    cd = jnp.dtype(weights[0].dtype)
    out_dt = cd if out_dtype is None else jnp.dtype(out_dtype)

    B, G = control_input.shape
    Bp_, P = perturbation.shape
    assert Bp_ == B
    H = weights[0].shape[1]          # hidden width (128)
    L = weights[4].shape[1]          # latent dim (32)

    in_itm = jnp.dtype(control_input.dtype).itemsize
    out_itm = out_dt.itemsize
    weight_bytes = sum(int(w.size) * jnp.dtype(w.dtype).itemsize for w in weights)

    try:
        phys = int(pltpu.get_tpu_info().vmem_capacity_bytes)   # 128 MiB v5e/v6e, 64 MiB v7x
    except Exception:
        phys = 64 << 20
    big_vmem = phys >= (100 << 20)   # v5e/v6e: 128 MiB, 1 TC ; v7x: 64 MiB, 2 TCs

    sub = 16 if cd == jnp.dtype(jnp.bfloat16) else 8
    # Per batch-row VMEM: double-buffered input/pert/output tiles + f32 decoder
    # activation + small hidden temps.
    bytes_per_row = 2 * G * in_itm + 2 * P * in_itm + 2 * G * out_itm + G * 4 + 8 * H * 4

    def _plan(w_bufs):
        avail = max((phys - (12 << 20)) - w_bufs * weight_bytes, 1 << 20)
        tb_budget = max(8, (avail // bytes_per_row) // 8 * 8)
        desired = tb if tb is not None else (512 if big_vmem else 256)
        if B <= 8:
            t = B                                   # full-extent batch block (always legal)
        else:
            step = 16 if (sub == 16 and B >= 16) else 8
            cap = (B // step) * step                # largest legal tile not exceeding B
            t = max(step, min(min(desired, tb_budget), cap) // step * step)
            # Dual-TensorCore chips (v7x): keep >= 2 parallel grid steps when possible.
            if (not big_vmem) and pl.cdiv(B, t) < 2 and B > step:
                t = min(cap, max(step, _round_up((B + 1) // 2, step)))
        grid = (pl.cdiv(B, t),)
        vmem_limit = int(min(phys - (4 << 20),
                             max(32 << 20,
                                 w_bufs * weight_bytes + t * bytes_per_row + (8 << 20))))
        return t, grid, vmem_limit

    cost = pl.CostEstimate(
        flops=int(2 * B * (2 * G * H + P * H + 3 * H * H + 3 * H * L)),
        transcendentals=int(2 * B * G),
        bytes_accessed=int(B * G * in_itm + B * P * in_itm + B * G * out_itm + weight_bytes))

    def _call(single_buffer_weights):
        w_bufs = 1 if single_buffer_weights else 2
        t, grid, vmem_limit = _plan(w_bufs)
        in_specs = [pl.BlockSpec((t, G), lambda i: (i, 0)),
                    pl.BlockSpec((t, P), lambda i: (i, 0))]
        if single_buffer_weights:
            # Constant index_map => multi-buffering the weights only wastes VMEM.
            wspecs = [pl.BlockSpec(w.shape, lambda i: (0, 0),
                                   pipeline_mode=pl.Buffered(1)) for w in weights]
        else:
            wspecs = [pl.BlockSpec(w.shape, lambda i: (0, 0)) for w in weights]
        out_spec = pl.BlockSpec((t, G), lambda i: (i, 0))
        return pl.pallas_call(
            latent_additive_kernel,
            out_shape=jax.ShapeDtypeStruct((B, G), out_dt),
            grid=grid,
            in_specs=in_specs + wspecs,
            out_specs=out_spec,
            compiler_params=pltpu.CompilerParams(
                dimension_semantics=("parallel",),
                vmem_limit_bytes=vmem_limit),
            cost_estimate=cost,
        )(control_input, perturbation, *weights)

    try:
        return _call(True)
    except (TypeError, ValueError, NotImplementedError, pltpu.LoweringException):
        # Narrow fallback for JAX versions that reject Buffered(1) on a top-level
        # pallas_call BlockSpec: default double-buffered weights, budget recomputed.
        return _call(False)


def reference_forward(control_input, perturbation, params):
    """Pure-JAX f32 reference matching the PyTorch forward."""
    def mlp(x, p):
        h = x @ p["w1"] + p["b1"]
        h = jnp.maximum(_layernorm(h), 0.0)
        h = h @ p["w2"] + p["b2"]
        h = jnp.maximum(_layernorm(h), 0.0)
        return h @ p["w3"] + p["b3"]

    lc = mlp(control_input, params["gene_encoder"])
    lp = mlp(perturbation, params["pert_encoder"])
    y = mlp(lc + lp, params["decoder"])
    return jax.nn.softplus(y)


if __name__ == "__main__":
    # Small demo shapes: batch, encoder_input_dim (n_genes), n_perts
    B, G, P = 8, 256, 16
    key = jax.random.PRNGKey(0)
    k_params, k_x, k_pert = jax.random.split(key, 3)

    params = init_params(k_params, n_genes=G, n_perts=P)
    control_input = jnp.abs(jax.random.normal(k_x, (B, G), jnp.float32))
    pert_idx = jax.random.randint(k_pert, (B,), 0, P)
    perturbation = jax.nn.one_hot(pert_idx, P, dtype=jnp.float32)

    ref = reference_forward(control_input, perturbation, params)

    # Weight cast hoisted out of the forward (done once per model).
    prepared_f32 = prepare_params(params, jnp.float32)
    prepared_bf16 = prepare_params(params, jnp.bfloat16)

    # 1) Exact-semantics check: f32 compute path, f32 output.
    out_f32 = jax.block_until_ready(
        latent_additive_forward(control_input, perturbation, prepared_f32,
                                out_dtype=jnp.float32))
    assert out_f32.shape == (B, G)
    assert jnp.allclose(out_f32, ref, atol=1e-3, rtol=1e-3), "f32 path mismatch"

    # 2) Fast path: bf16 MXU operands and bf16 output, f32 accumulation/LN/softplus.
    out_bf16 = jax.block_until_ready(
        latent_additive_forward(control_input, perturbation, prepared_bf16))
    assert out_bf16.shape == (B, G) and out_bf16.dtype == jnp.bfloat16
    assert jnp.allclose(out_bf16.astype(jnp.float32), ref, atol=5e-2, rtol=5e-2), \
        "bf16 path mismatch"

    # 3) Ragged batch + non-multiple-of-128 gene dim: exercises the un-padded cdiv
    #    grid (partial tail batch block) and the full-extent (masked-tail) gene axis.
    B2, G2 = 20, 200
    k2p, k2x, k2i = jax.random.split(jax.random.PRNGKey(1), 3)
    params2 = init_params(k2p, n_genes=G2, n_perts=P)
    x2 = jnp.abs(jax.random.normal(k2x, (B2, G2), jnp.float32))
    pert2 = jax.nn.one_hot(jax.random.randint(k2i, (B2,), 0, P), P, dtype=jnp.float32)
    prepared2 = prepare_params(params2, jnp.bfloat16)
    out2 = jax.block_until_ready(
        latent_additive_forward(x2, pert2, prepared2, tb=16))
    ref2 = reference_forward(x2, pert2, params2)
    assert out2.shape == (B2, G2)
    assert jnp.allclose(out2.astype(jnp.float32), ref2, atol=5e-2, rtol=5e-2), \
        "ragged-grid path mismatch"

    print("KERNEL_OK")
</pallas_src>

<mosaic_0001>
module attributes {stable_mosaic.version = 11 : i64} {
  func.func @latent_additive_kernel(%arg0: i32, %arg1: memref<8x256xf32, #tpu.memory_space<vmem>>, %arg2: memref<8x16xf32, #tpu.memory_space<vmem>>, %arg3: memref<256x128xf32, #tpu.memory_space<vmem>>, %arg4: memref<1x128xf32, #tpu.memory_space<vmem>>, %arg5: memref<128x128xf32, #tpu.memory_space<vmem>>, %arg6: memref<1x128xf32, #tpu.memory_space<vmem>>, %arg7: memref<128x32xf32, #tpu.memory_space<vmem>>, %arg8: memref<1x32xf32, #tpu.memory_space<vmem>>, %arg9: memref<16x128xf32, #tpu.memory_space<vmem>>, %arg10: memref<1x128xf32, #tpu.memory_space<vmem>>, %arg11: memref<128x128xf32, #tpu.memory_space<vmem>>, %arg12: memref<1x128xf32, #tpu.memory_space<vmem>>, %arg13: memref<128x32xf32, #tpu.memory_space<vmem>>, %arg14: memref<1x32xf32, #tpu.memory_space<vmem>>, %arg15: memref<32x128xf32, #tpu.memory_space<vmem>>, %arg16: memref<1x128xf32, #tpu.memory_space<vmem>>, %arg17: memref<128x128xf32, #tpu.memory_space<vmem>>, %arg18: memref<1x128xf32, #tpu.memory_space<vmem>>, %arg19: memref<128x256xf32, #tpu.memory_space<vmem>>, %arg20: memref<1x256xf32, #tpu.memory_space<vmem>>, %arg21: memref<8x256xf32, #tpu.memory_space<vmem>>) attributes {dimension_semantics = [#tpu.dimension_semantics<parallel>], iteration_bounds = array<i64: 1>, scalar_prefetch = 0 : i64, scratch_operands = 0 : i64, tpu.core_type = #tpu.core_type<tc>, window_params = [{transform_indices = @transform_0, window_bounds = array<i64: 8, 256>}, {transform_indices = @transform_1, window_bounds = array<i64: 8, 16>}, {pipeline_mode = #tpu.pipeline_mode<synchronous>, transform_indices = @transform_2, window_bounds = array<i64: 256, 128>}, {pipeline_mode = #tpu.pipeline_mode<synchronous>, transform_indices = @transform_3, window_bounds = array<i64: 1, 128>}, {pipeline_mode = #tpu.pipeline_mode<synchronous>, transform_indices = @transform_4, window_bounds = array<i64: 128, 128>}, {pipeline_mode = #tpu.pipeline_mode<synchronous>, transform_indices = @transform_5, window_bounds = array<i64: 1, 128>}, {pipeline_mode = #tpu.pipeline_mode<synchronous>, transform_indices = @transform_6, window_bounds = array<i64: 128, 32>}, {pipeline_mode = #tpu.pipeline_mode<synchronous>, transform_indices = @transform_7, window_bounds = array<i64: 1, 32>}, {pipeline_mode = #tpu.pipeline_mode<synchronous>, transform_indices = @transform_8, window_bounds = array<i64: 16, 128>}, {pipeline_mode = #tpu.pipeline_mode<synchronous>, transform_indices = @transform_9, window_bounds = array<i64: 1, 128>}, {pipeline_mode = #tpu.pipeline_mode<synchronous>, transform_indices = @transform_10, window_bounds = array<i64: 128, 128>}, {pipeline_mode = #tpu.pipeline_mode<synchronous>, transform_indices = @transform_11, window_bounds = array<i64: 1, 128>}, {pipeline_mode = #tpu.pipeline_mode<synchronous>, transform_indices = @transform_12, window_bounds = array<i64: 128, 32>}, {pipeline_mode = #tpu.pipeline_mode<synchronous>, transform_indices = @transform_13, window_bounds = array<i64: 1, 32>}, {pipeline_mode = #tpu.pipeline_mode<synchronous>, transform_indices = @transform_14, window_bounds = array<i64: 32, 128>}, {pipeline_mode = #tpu.pipeline_mode<synchronous>, transform_indices = @transform_15, window_bounds = array<i64: 1, 128>}, {pipeline_mode = #tpu.pipeline_mode<synchronous>, transform_indices = @transform_16, window_bounds = array<i64: 128, 128>}, {pipeline_mode = #tpu.pipeline_mode<synchronous>, transform_indices = @transform_17, window_bounds = array<i64: 1, 128>}, {pipeline_mode = #tpu.pipeline_mode<synchronous>, transform_indices = @transform_18, window_bounds = array<i64: 128, 256>}, {pipeline_mode = #tpu.pipeline_mode<synchronous>, transform_indices = @transform_19, window_bounds = array<i64: 1, 256>}, {transform_indices = @transform_20, window_bounds = array<i64: 8, 256>}]} {
    %c0 = arith.constant 0 : index
    %c0_0 = arith.constant 0 : index
    %0 = vector.load %arg1[%c0, %c0_0] : memref<8x256xf32, #tpu.memory_space<vmem>>, vector<8x256xf32>
    %c0_1 = arith.constant 0 : index
    %c0_2 = arith.constant 0 : index
    %1 = vector.load %arg3[%c0_1, %c0_2] : memref<256x128xf32, #tpu.memory_space<vmem>>, vector<256x128xf32>
    %c0_3 = arith.constant 0 : index
    %c0_4 = arith.constant 0 : index
    %2 = vector.load %arg4[%c0_3, %c0_4] : memref<1x128xf32, #tpu.memory_space<vmem>>, vector<1x128xf32>
    %c0_5 = arith.constant 0 : index
    %c0_6 = arith.constant 0 : index
    %3 = vector.load %arg5[%c0_5, %c0_6] : memref<128x128xf32, #tpu.memory_space<vmem>>, vector<128x128xf32>
    %c0_7 = arith.constant 0 : index
    %c0_8 = arith.constant 0 : index
    %4 = vector.load %arg6[%c0_7, %c0_8] : memref<1x128xf32, #tpu.memory_space<vmem>>, vector<1x128xf32>
    %c0_9 = arith.constant 0 : index
    %c0_10 = arith.constant 0 : index
    %5 = vector.load %arg7[%c0_9, %c0_10] : memref<128x32xf32, #tpu.memory_space<vmem>>, vector<128x32xf32>
    %c0_11 = arith.constant 0 : index
    %c0_12 = arith.constant 0 : index
    %6 = vector.load %arg8[%c0_11, %c0_12] : memref<1x32xf32, #tpu.memory_space<vmem>>, vector<1x32xf32>
    %cst = arith.constant dense<0.000000e+00> : vector<8x128xf32>
    %7 = tpu.matmul %0, %1, %cst {dimension_numbers = #tpu.dot_dimension_numbers<[1], [0], [0], [1], [0, 0, 1, 1], [], []>} : vector<8x256xf32>, vector<256x128xf32>, vector<8x128xf32> -> vector<8x128xf32>
    %8 = vector.broadcast %2 : vector<1x128xf32> to vector<8x128xf32>
    %9 = arith.addf %7, %8 : vector<8x128xf32>
    %cst_13 = arith.constant dense<0.000000e+00> : vector<8xf32>
    %10 = vector.multi_reduction <add>, %9, %cst_13 [1] : vector<8x128xf32> to vector<8xf32>
    %11 = vector.shape_cast %10 : vector<8xf32> to vector<8x1xf32>
    %cst_14 = arith.constant 1.280000e+02 : f32
    %12 = vector.broadcast %cst_14 : f32 to vector<8x1xf32>
    %13 = arith.divf %11, %12 : vector<8x1xf32>
    %14 = vector.broadcast %13 : vector<8x1xf32> to vector<8x128xf32>
    %15 = arith.subf %9, %14 : vector<8x128xf32>
    %16 = arith.mulf %15, %15 : vector<8x128xf32>
    %cst_15 = arith.constant dense<0.000000e+00> : vector<8xf32>
    %17 = vector.multi_reduction <add>, %16, %cst_15 [1] : vector<8x128xf32> to vector<8xf32>
    %18 = vector.shape_cast %17 : vector<8xf32> to vector<8x1xf32>
    %cst_16 = arith.constant 1.280000e+02 : f32
    %19 = vector.broadcast %cst_16 : f32 to vector<8x1xf32>
    %20 = arith.divf %18, %19 : vector<8x1xf32>
    %21 = vector.broadcast %13 : vector<8x1xf32> to vector<8x128xf32>
    %22 = arith.subf %9, %21 : vector<8x128xf32>
    %cst_17 = arith.constant 9.99999974E-6 : f32
    %23 = vector.broadcast %cst_17 : f32 to vector<8x1xf32>
    %24 = arith.addf %20, %23 : vector<8x1xf32>
    %25 = math.rsqrt %24 : vector<8x1xf32>
    %26 = vector.broadcast %25 : vector<8x1xf32> to vector<8x128xf32>
    %27 = arith.mulf %22, %26 : vector<8x128xf32>
    %cst_18 = arith.constant 0.000000e+00 : f32
    %28 = vector.broadcast %cst_18 : f32 to vector<8x128xf32>
    %29 = arith.maximumf %27, %28 : vector<8x128xf32>
    %cst_19 = arith.constant dense<0.000000e+00> : vector<8x128xf32>
    %30 = tpu.matmul %29, %3, %cst_19 {dimension_numbers = #tpu.dot_dimension_numbers<[1], [0], [0], [1], [0, 0, 1, 1], [], []>} : vector<8x128xf32>, vector<128x128xf32>, vector<8x128xf32> -> vector<8x128xf32>
    %31 = vector.broadcast %4 : vector<1x128xf32> to vector<8x128xf32>
    %32 = arith.addf %30, %31 : vector<8x128xf32>
    %cst_20 = arith.constant dense<0.000000e+00> : vector<8xf32>
    %33 = vector.multi_reduction <add>, %32, %cst_20 [1] : vector<8x128xf32> to vector<8xf32>
    %34 = vector.shape_cast %33 : vector<8xf32> to vector<8x1xf32>
    %cst_21 = arith.constant 1.280000e+02 : f32
    %35 = vector.broadcast %cst_21 : f32 to vector<8x1xf32>
    %36 = arith.divf %34, %35 : vector<8x1xf32>
    %37 = vector.broadcast %36 : vector<8x1xf32> to vector<8x128xf32>
    %38 = arith.subf %32, %37 : vector<8x128xf32>
    %39 = arith.mulf %38, %38 : vector<8x128xf32>
    %cst_22 = arith.constant dense<0.000000e+00> : vector<8xf32>
    %40 = vector.multi_reduction <add>, %39, %cst_22 [1] : vector<8x128xf32> to vector<8xf32>
    %41 = vector.shape_cast %40 : vector<8xf32> to vector<8x1xf32>
    %cst_23 = arith.constant 1.280000e+02 : f32
    %42 = vector.broadcast %cst_23 : f32 to vector<8x1xf32>
    %43 = arith.divf %41, %42 : vector<8x1xf32>
    %44 = vector.broadcast %36 : vector<8x1xf32> to vector<8x128xf32>
    %45 = arith.subf %32, %44 : vector<8x128xf32>
    %cst_24 = arith.constant 9.99999974E-6 : f32
    %46 = vector.broadcast %cst_24 : f32 to vector<8x1xf32>
    %47 = arith.addf %43, %46 : vector<8x1xf32>
    %48 = math.rsqrt %47 : vector<8x1xf32>
    %49 = vector.broadcast %48 : vector<8x1xf32> to vector<8x128xf32>
    %50 = arith.mulf %45, %49 : vector<8x128xf32>
    %cst_25 = arith.constant 0.000000e+00 : f32
    %51 = vector.broadcast %cst_25 : f32 to vector<8x128xf32>
    %52 = arith.maximumf %50, %51 : vector<8x128xf32>
    %cst_26 = arith.constant dense<0.000000e+00> : vector<8x32xf32>
    %53 = tpu.matmul %52, %5, %cst_26 {dimension_numbers = #tpu.dot_dimension_numbers<[1], [0], [0], [1], [0, 0, 1, 1], [], []>} : vector<8x128xf32>, vector<128x32xf32>, vector<8x32xf32> -> vector<8x32xf32>
    %54 = vector.broadcast %6 : vector<1x32xf32> to vector<8x32xf32>
    %55 = arith.addf %53, %54 : vector<8x32xf32>
    %c0_27 = arith.constant 0 : index
    %c0_28 = arith.constant 0 : index
    %56 = vector.load %arg2[%c0_27, %c0_28] : memref<8x16xf32, #tpu.memory_space<vmem>>, vector<8x16xf32>
    %c0_29 = arith.constant 0 : index
    %c0_30 = arith.constant 0 : index
    %57 = vector.load %arg9[%c0_29, %c0_30] : memref<16x128xf32, #tpu.memory_space<vmem>>, vector<16x128xf32>
    %c0_31 = arith.constant 0 : index
    %c0_32 = arith.constant 0 : index
    %58 = vector.load %arg10[%c0_31, %c0_32] : memref<1x128xf32, #tpu.memory_space<vmem>>, vector<1x128xf32>
    %c0_33 = arith.constant 0 : index
    %c0_34 = arith.constant 0 : index
    %59 = vector.load %arg11[%c0_33, %c0_34] : memref<128x128xf32, #tpu.memory_space<vmem>>, vector<128x128xf32>
    %c0_35 = arith.constant 0 : index
    %c0_36 = arith.constant 0 : index
    %60 = vector.load %arg12[%c0_35, %c0_36] : memref<1x128xf32, #tpu.memory_space<vmem>>, vector<1x128xf32>
    %c0_37 = arith.constant 0 : index
    %c0_38 = arith.constant 0 : index
    %61 = vector.load %arg13[%c0_37, %c0_38] : memref<128x32xf32, #tpu.memory_space<vmem>>, vector<128x32xf32>
    %c0_39 = arith.constant 0 : index
    %c0_40 = arith.constant 0 : index
    %62 = vector.load %arg14[%c0_39, %c0_40] : memref<1x32xf32, #tpu.memory_space<vmem>>, vector<1x32xf32>
    %cst_41 = arith.constant dense<0.000000e+00> : vector<8x128xf32>
    %63 = tpu.matmul %56, %57, %cst_41 {dimension_numbers = #tpu.dot_dimension_numbers<[1], [0], [0], [1], [0, 0, 1, 1], [], []>} : vector<8x16xf32>, vector<16x128xf32>, vector<8x128xf32> -> vector<8x128xf32>
    %64 = vector.broadcast %58 : vector<1x128xf32> to vector<8x128xf32>
    %65 = arith.addf %63, %64 : vector<8x128xf32>
    %cst_42 = arith.constant dense<0.000000e+00> : vector<8xf32>
    %66 = vector.multi_reduction <add>, %65, %cst_42 [1] : vector<8x128xf32> to vector<8xf32>
    %67 = vector.shape_cast %66 : vector<8xf32> to vector<8x1xf32>
    %cst_43 = arith.constant 1.280000e+02 : f32
    %68 = vector.broadcast %cst_43 : f32 to vector<8x1xf32>
    %69 = arith.divf %67, %68 : vector<8x1xf32>
    %70 = vector.broadcast %69 : vector<8x1xf32> to vector<8x128xf32>
    %71 = arith.subf %65, %70 : vector<8x128xf32>
    %72 = arith.mulf %71, %71 : vector<8x128xf32>
    %cst_44 = arith.constant dense<0.000000e+00> : vector<8xf32>
    %73 = vector.multi_reduction <add>, %72, %cst_44 [1] : vector<8x128xf32> to vector<8xf32>
    %74 = vector.shape_cast %73 : vector<8xf32> to vector<8x1xf32>
    %cst_45 = arith.constant 1.280000e+02 : f32
    %75 = vector.broadcast %cst_45 : f32 to vector<8x1xf32>
    %76 = arith.divf %74, %75 : vector<8x1xf32>
    %77 = vector.broadcast %69 : vector<8x1xf32> to vector<8x128xf32>
    %78 = arith.subf %65, %77 : vector<8x128xf32>
    %cst_46 = arith.constant 9.99999974E-6 : f32
    %79 = vector.broadcast %cst_46 : f32 to vector<8x1xf32>
    %80 = arith.addf %76, %79 : vector<8x1xf32>
    %81 = math.rsqrt %80 : vector<8x1xf32>
    %82 = vector.broadcast %81 : vector<8x1xf32> to vector<8x128xf32>
    %83 = arith.mulf %78, %82 : vector<8x128xf32>
    %cst_47 = arith.constant 0.000000e+00 : f32
    %84 = vector.broadcast %cst_47 : f32 to vector<8x128xf32>
    %85 = arith.maximumf %83, %84 : vector<8x128xf32>
    %cst_48 = arith.constant dense<0.000000e+00> : vector<8x128xf32>
    %86 = tpu.matmul %85, %59, %cst_48 {dimension_numbers = #tpu.dot_dimension_numbers<[1], [0], [0], [1], [0, 0, 1, 1], [], []>} : vector<8x128xf32>, vector<128x128xf32>, vector<8x128xf32> -> vector<8x128xf32>
    %87 = vector.broadcast %60 : vector<1x128xf32> to vector<8x128xf32>
    %88 = arith.addf %86, %87 : vector<8x128xf32>
    %cst_49 = arith.constant dense<0.000000e+00> : vector<8xf32>
    %89 = vector.multi_reduction <add>, %88, %cst_49 [1] : vector<8x128xf32> to vector<8xf32>
    %90 = vector.shape_cast %89 : vector<8xf32> to vector<8x1xf32>
    %cst_50 = arith.constant 1.280000e+02 : f32
    %91 = vector.broadcast %cst_50 : f32 to vector<8x1xf32>
    %92 = arith.divf %90, %91 : vector<8x1xf32>
    %93 = vector.broadcast %92 : vector<8x1xf32> to vector<8x128xf32>
    %94 = arith.subf %88, %93 : vector<8x128xf32>
    %95 = arith.mulf %94, %94 : vector<8x128xf32>
    %cst_51 = arith.constant dense<0.000000e+00> : vector<8xf32>
    %96 = vector.multi_reduction <add>, %95, %cst_51 [1] : vector<8x128xf32> to vector<8xf32>
    %97 = vector.shape_cast %96 : vector<8xf32> to vector<8x1xf32>
    %cst_52 = arith.constant 1.280000e+02 : f32
    %98 = vector.broadcast %cst_52 : f32 to vector<8x1xf32>
    %99 = arith.divf %97, %98 : vector<8x1xf32>
    %100 = vector.broadcast %92 : vector<8x1xf32> to vector<8x128xf32>
    %101 = arith.subf %88, %100 : vector<8x128xf32>
    %cst_53 = arith.constant 9.99999974E-6 : f32
    %102 = vector.broadcast %cst_53 : f32 to vector<8x1xf32>
    %103 = arith.addf %99, %102 : vector<8x1xf32>
    %104 = math.rsqrt %103 : vector<8x1xf32>
    %105 = vector.broadcast %104 : vector<8x1xf32> to vector<8x128xf32>
    %106 = arith.mulf %101, %105 : vector<8x128xf32>
    %cst_54 = arith.constant 0.000000e+00 : f32
    %107 = vector.broadcast %cst_54 : f32 to vector<8x128xf32>
    %108 = arith.maximumf %106, %107 : vector<8x128xf32>
    %cst_55 = arith.constant dense<0.000000e+00> : vector<8x32xf32>
    %109 = tpu.matmul %108, %61, %cst_55 {dimension_numbers = #tpu.dot_dimension_numbers<[1], [0], [0], [1], [0, 0, 1, 1], [], []>} : vector<8x128xf32>, vector<128x32xf32>, vector<8x32xf32> -> vector<8x32xf32>
    %110 = vector.broadcast %62 : vector<1x32xf32> to vector<8x32xf32>
    %111 = arith.addf %109, %110 : vector<8x32xf32>
    %112 = arith.addf %55, %111 : vector<8x32xf32>
    %c0_56 = arith.constant 0 : index
    %c0_57 = arith.constant 0 : index
    %113 = vector.load %arg15[%c0_56, %c0_57] : memref<32x128xf32, #tpu.memory_space<vmem>>, vector<32x128xf32>
    %c0_58 = arith.constant 0 : index
    %c0_59 = arith.constant 0 : index
    %114 = vector.load %arg16[%c0_58, %c0_59] : memref<1x128xf32, #tpu.memory_space<vmem>>, vector<1x128xf32>
    %c0_60 = arith.constant 0 : index
    %c0_61 = arith.constant 0 : index
    %115 = vector.load %arg17[%c0_60, %c0_61] : memref<128x128xf32, #tpu.memory_space<vmem>>, vector<128x128xf32>
    %c0_62 = arith.constant 0 : index
    %c0_63 = arith.constant 0 : index
    %116 = vector.load %arg18[%c0_62, %c0_63] : memref<1x128xf32, #tpu.memory_space<vmem>>, vector<1x128xf32>
    %c0_64 = arith.constant 0 : index
    %c0_65 = arith.constant 0 : index
    %117 = vector.load %arg19[%c0_64, %c0_65] : memref<128x256xf32, #tpu.memory_space<vmem>>, vector<128x256xf32>
    %c0_66 = arith.constant 0 : index
    %c0_67 = arith.constant 0 : index
    %118 = vector.load %arg20[%c0_66, %c0_67] : memref<1x256xf32, #tpu.memory_space<vmem>>, vector<1x256xf32>
    %cst_68 = arith.constant dense<0.000000e+00> : vector<8x128xf32>
    %119 = tpu.matmul %112, %113, %cst_68 {dimension_numbers = #tpu.dot_dimension_numbers<[1], [0], [0], [1], [0, 0, 1, 1], [], []>} : vector<8x32xf32>, vector<32x128xf32>, vector<8x128xf32> -> vector<8x128xf32>
    %120 = vector.broadcast %114 : vector<1x128xf32> to vector<8x128xf32>
    %121 = arith.addf %119, %120 : vector<8x128xf32>
    %cst_69 = arith.constant dense<0.000000e+00> : vector<8xf32>
    %122 = vector.multi_reduction <add>, %121, %cst_69 [1] : vector<8x128xf32> to vector<8xf32>
    %123 = vector.shape_cast %122 : vector<8xf32> to vector<8x1xf32>
    %cst_70 = arith.constant 1.280000e+02 : f32
    %124 = vector.broadcast %cst_70 : f32 to vector<8x1xf32>
    %125 = arith.divf %123, %124 : vector<8x1xf32>
    %126 = vector.broadcast %125 : vector<8x1xf32> to vector<8x128xf32>
    %127 = arith.subf %121, %126 : vector<8x128xf32>
    %128 = arith.mulf %127, %127 : vector<8x128xf32>
    %cst_71 = arith.constant dense<0.000000e+00> : vector<8xf32>
    %129 = vector.multi_reduction <add>, %128, %cst_71 [1] : vector<8x128xf32> to vector<8xf32>
    %130 = vector.shape_cast %129 : vector<8xf32> to vector<8x1xf32>
    %cst_72 = arith.constant 1.280000e+02 : f32
    %131 = vector.broadcast %cst_72 : f32 to vector<8x1xf32>
    %132 = arith.divf %130, %131 : vector<8x1xf32>
    %133 = vector.broadcast %125 : vector<8x1xf32> to vector<8x128xf32>
    %134 = arith.subf %121, %133 : vector<8x128xf32>
    %cst_73 = arith.constant 9.99999974E-6 : f32
    %135 = vector.broadcast %cst_73 : f32 to vector<8x1xf32>
    %136 = arith.addf %132, %135 : vector<8x1xf32>
    %137 = math.rsqrt %136 : vector<8x1xf32>
    %138 = vector.broadcast %137 : vector<8x1xf32> to vector<8x128xf32>
    %139 = arith.mulf %134, %138 : vector<8x128xf32>
    %cst_74 = arith.constant 0.000000e+00 : f32
    %140 = vector.broadcast %cst_74 : f32 to vector<8x128xf32>
    %141 = arith.maximumf %139, %140 : vector<8x128xf32>
    %cst_75 = arith.constant dense<0.000000e+00> : vector<8x128xf32>
    %142 = tpu.matmul %141, %115, %cst_75 {dimension_numbers = #tpu.dot_dimension_numbers<[1], [0], [0], [1], [0, 0, 1, 1], [], []>} : vector<8x128xf32>, vector<128x128xf32>, vector<8x128xf32> -> vector<8x128xf32>
    %143 = vector.broadcast %116 : vector<1x128xf32> to vector<8x128xf32>
    %144 = arith.addf %142, %143 : vector<8x128xf32>
    %cst_76 = arith.constant dense<0.000000e+00> : vector<8xf32>
    %145 = vector.multi_reduction <add>, %144, %cst_76 [1] : vector<8x128xf32> to vector<8xf32>
    %146 = vector.shape_cast %145 : vector<8xf32> to vector<8x1xf32>
    %cst_77 = arith.constant 1.280000e+02 : f32
    %147 = vector.broadcast %cst_77 : f32 to vector<8x1xf32>
    %148 = arith.divf %146, %147 : vector<8x1xf32>
    %149 = vector.broadcast %148 : vector<8x1xf32> to vector<8x128xf32>
    %150 = arith.subf %144, %149 : vector<8x128xf32>
    %151 = arith.mulf %150, %150 : vector<8x128xf32>
    %cst_78 = arith.constant dense<0.000000e+00> : vector<8xf32>
    %152 = vector.multi_reduction <add>, %151, %cst_78 [1] : vector<8x128xf32> to vector<8xf32>
    %153 = vector.shape_cast %152 : vector<8xf32> to vector<8x1xf32>
    %cst_79 = arith.constant 1.280000e+02 : f32
    %154 = vector.broadcast %cst_79 : f32 to vector<8x1xf32>
    %155 = arith.divf %153, %154 : vector<8x1xf32>
    %156 = vector.broadcast %148 : vector<8x1xf32> to vector<8x128xf32>
    %157 = arith.subf %144, %156 : vector<8x128xf32>
    %cst_80 = arith.constant 9.99999974E-6 : f32
    %158 = vector.broadcast %cst_80 : f32 to vector<8x1xf32>
    %159 = arith.addf %155, %158 : vector<8x1xf32>
    %160 = math.rsqrt %159 : vector<8x1xf32>
    %161 = vector.broadcast %160 : vector<8x1xf32> to vector<8x128xf32>
    %162 = arith.mulf %157, %161 : vector<8x128xf32>
    %cst_81 = arith.constant 0.000000e+00 : f32
    %163 = vector.broadcast %cst_81 : f32 to vector<8x128xf32>
    %164 = arith.maximumf %162, %163 : vector<8x128xf32>
    %cst_82 = arith.constant dense<0.000000e+00> : vector<8x256xf32>
    %165 = tpu.matmul %164, %117, %cst_82 {dimension_numbers = #tpu.dot_dimension_numbers<[1], [0], [0], [1], [0, 0, 1, 1], [], []>} : vector<8x128xf32>, vector<128x256xf32>, vector<8x256xf32> -> vector<8x256xf32>
    %166 = vector.broadcast %118 : vector<1x256xf32> to vector<8x256xf32>
    %167 = arith.addf %165, %166 : vector<8x256xf32>
    %cst_83 = arith.constant 0.000000e+00 : f32
    %168 = vector.broadcast %cst_83 : f32 to vector<8x256xf32>
    %169 = arith.maximumf %167, %168 : vector<8x256xf32>
    %170 = math.absf %167 : vector<8x256xf32>
    %cst_84 = arith.constant 0.000000e+00 : f32
    %171 = vector.broadcast %cst_84 : f32 to vector<8x256xf32>
    %172 = arith.subf %171, %170 : vector<8x256xf32>
    %173 = math.exp %172 : vector<8x256xf32>
    %174 = math.log1p %173 : vector<8x256xf32>
    %175 = arith.addf %169, %174 : vector<8x256xf32>
    %c0_85 = arith.constant 0 : index
    %c0_86 = arith.constant 0 : index
    %176 = vector.load %arg21[%c0_85, %c0_86] : memref<8x256xf32, #tpu.memory_space<vmem>>, vector<8x256xf32>
    tpu.vector_store %arg21[%c0_85, %c0_86], %175 {strides = array<i32>} : memref<8x256xf32, #tpu.memory_space<vmem>>, vector<8x256xf32>,
    return
  }
  func.func @transform_0(%arg0: i32) -> (i32, i32) {
    %c0_i32 = arith.constant 0 : i32
    %c0_i32_0 = arith.constant 0 : i32
    return %arg0, %c0_i32 : i32, i32
  }
  func.func @transform_1(%arg0: i32) -> (i32, i32) {
    %c0_i32 = arith.constant 0 : i32
    %c0_i32_0 = arith.constant 0 : i32
    return %arg0, %c0_i32 : i32, i32
  }
  func.func @transform_2(%arg0: i32) -> (i32, i32) {
    %c0_i32 = arith.constant 0 : i32
    %c0_i32_0 = arith.constant 0 : i32
    %c0_i32_1 = arith.constant 0 : i32
    return %c0_i32, %c0_i32_0 : i32, i32
  }
  func.func @transform_3(%arg0: i32) -> (i32, i32) {
    %c0_i32 = arith.constant 0 : i32
    %c0_i32_0 = arith.constant 0 : i32
    %c0_i32_1 = arith.constant 0 : i32
    return %c0_i32, %c0_i32_0 : i32, i32
  }
  func.func @transform_4(%arg0: i32) -> (i32, i32) {
    %c0_i32 = arith.constant 0 : i32
    %c0_i32_0 = arith.constant 0 : i32
    %c0_i32_1 = arith.constant 0 : i32
    return %c0_i32, %c0_i32_0 : i32, i32
  }
  func.func @transform_5(%arg0: i32) -> (i32, i32) {
    %c0_i32 = arith.constant 0 : i32
    %c0_i32_0 = arith.constant 0 : i32
    %c0_i32_1 = arith.constant 0 : i32
    return %c0_i32, %c0_i32_0 : i32, i32
  }
  func.func @transform_6(%arg0: i32) -> (i32, i32) {
    %c0_i32 = arith.constant 0 : i32
    %c0_i32_0 = arith.constant 0 : i32
    %c0_i32_1 = arith.constant 0 : i32
    return %c0_i32, %c0_i32_0 : i32, i32
  }
  func.func @transform_7(%arg0: i32) -> (i32, i32) {
    %c0_i32 = arith.constant 0 : i32
    %c0_i32_0 = arith.constant 0 : i32
    %c0_i32_1 = arith.constant 0 : i32
    return %c0_i32, %c0_i32_0 : i32, i32
  }
  func.func @transform_8(%arg0: i32) -> (i32, i32) {
    %c0_i32 = arith.constant 0 : i32
    %c0_i32_0 = arith.constant 0 : i32
    %c0_i32_1 = arith.constant 0 : i32
    return %c0_i32, %c0_i32_0 : i32, i32
  }
  func.func @transform_9(%arg0: i32) -> (i32, i32) {
    %c0_i32 = arith.constant 0 : i32
    %c0_i32_0 = arith.constant 0 : i32
    %c0_i32_1 = arith.constant 0 : i32
    return %c0_i32, %c0_i32_0 : i32, i32
  }
  func.func @transform_10(%arg0: i32) -> (i32, i32) {
    %c0_i32 = arith.constant 0 : i32
    %c0_i32_0 = arith.constant 0 : i32
    %c0_i32_1 = arith.constant 0 : i32
    return %c0_i32, %c0_i32_0 : i32, i32
  }
  func.func @transform_11(%arg0: i32) -> (i32, i32) {
    %c0_i32 = arith.constant 0 : i32
    %c0_i32_0 = arith.constant 0 : i32
    %c0_i32_1 = arith.constant 0 : i32
    return %c0_i32, %c0_i32_0 : i32, i32
  }
  func.func @transform_12(%arg0: i32) -> (i32, i32) {
    %c0_i32 = arith.constant 0 : i32
    %c0_i32_0 = arith.constant 0 : i32
    %c0_i32_1 = arith.constant 0 : i32
    return %c0_i32, %c0_i32_0 : i32, i32
  }
  func.func @transform_13(%arg0: i32) -> (i32, i32) {
    %c0_i32 = arith.constant 0 : i32
    %c0_i32_0 = arith.constant 0 : i32
    %c0_i32_1 = arith.constant 0 : i32
    return %c0_i32, %c0_i32_0 : i32, i32
  }
  func.func @transform_14(%arg0: i32) -> (i32, i32) {
    %c0_i32 = arith.constant 0 : i32
    %c0_i32_0 = arith.constant 0 : i32
    %c0_i32_1 = arith.constant 0 : i32
    return %c0_i32, %c0_i32_0 : i32, i32
  }
  func.func @transform_15(%arg0: i32) -> (i32, i32) {
    %c0_i32 = arith.constant 0 : i32
    %c0_i32_0 = arith.constant 0 : i32
    %c0_i32_1 = arith.constant 0 : i32
    return %c0_i32, %c0_i32_0 : i32, i32
  }
  func.func @transform_16(%arg0: i32) -> (i32, i32) {
    %c0_i32 = arith.constant 0 : i32
    %c0_i32_0 = arith.constant 0 : i32
    %c0_i32_1 = arith.constant 0 : i32
    return %c0_i32, %c0_i32_0 : i32, i32
  }
  func.func @transform_17(%arg0: i32) -> (i32, i32) {
    %c0_i32 = arith.constant 0 : i32
    %c0_i32_0 = arith.constant 0 : i32
    %c0_i32_1 = arith.constant 0 : i32
    return %c0_i32, %c0_i32_0 : i32, i32
  }
  func.func @transform_18(%arg0: i32) -> (i32, i32) {
    %c0_i32 = arith.constant 0 : i32
    %c0_i32_0 = arith.constant 0 : i32
    %c0_i32_1 = arith.constant 0 : i32
    return %c0_i32, %c0_i32_0 : i32, i32
  }
  func.func @transform_19(%arg0: i32) -> (i32, i32) {
    %c0_i32 = arith.constant 0 : i32
    %c0_i32_0 = arith.constant 0 : i32
    %c0_i32_1 = arith.constant 0 : i32
    return %c0_i32, %c0_i32_0 : i32, i32
  }
  func.func @transform_20(%arg0: i32) -> (i32, i32) {
    %c0_i32 = arith.constant 0 : i32
    %c0_i32_0 = arith.constant 0 : i32
    return %arg0, %c0_i32 : i32, i32
  }
}

</mosaic_0001>

<llo_original>
// kernel: tpu_custom_call.1
$region0: #{tpu_custom_call.1}
  #allocation0 [shape = 'u32[]', space=smem, size = 0x4, offset = 0x4, fixed_abs, tag = 'smem constant byte address 0x4 - core index']
  #allocation1 [shape = 'u32[144,128]{1,0:T(1,128)}', space=vmem, size = 0x12000, scoped, tag = 'internal scratch']
  %s0 = inlined_call_operand.hbm [shape: f32[8,256], index: 0, kind: input, shape index: {}]
  %s1 = inlined_call_operand.hbm [shape: f32[8,16], index: 1, kind: input, shape index: {}]
  %s2 = inlined_call_operand.vmem [shape: f32[256,128], index: 2, kind: input, shape index: {}]
  %s3 = inlined_call_operand.hbm [shape: f32[1,128], index: 3, kind: input, shape index: {}]
  %s4 = inlined_call_operand.hbm [shape: f32[128,128], index: 4, kind: input, shape index: {}]
  %s5 = inlined_call_operand.hbm [shape: f32[1,128], index: 5, kind: input, shape index: {}]
  %s6 = inlined_call_operand.vmem [shape: f32[128,32], index: 6, kind: input, shape index: {}]
  %s7 = inlined_call_operand.vmem [shape: f32[1,32], index: 7, kind: input, shape index: {}]
  %s8 = inlined_call_operand.vmem [shape: f32[16,128], index: 8, kind: input, shape index: {}]
  %s9 = inlined_call_operand.vmem [shape: f32[1,128], index: 9, kind: input, shape index: {}]
  %s10 = inlined_call_operand.hbm [shape: f32[128,128], index: 10, kind: input, shape index: {}]
  %s11 = inlined_call_operand.vmem [shape: f32[1,128], index: 11, kind: input, shape index: {}]
  %s12 = inlined_call_operand.vmem [shape: f32[128,32], index: 12, kind: input, shape index: {}]
  %s13 = inlined_call_operand.vmem [shape: f32[1,32], index: 13, kind: input, shape index: {}]
  %s14 = inlined_call_operand.vmem [shape: f32[32,128], index: 14, kind: input, shape index: {}]
  %s15 = inlined_call_operand.vmem [shape: f32[1,128], index: 15, kind: input, shape index: {}]
  %s16 = inlined_call_operand.hbm [shape: f32[128,128], index: 16, kind: input, shape index: {}]
  %s17 = inlined_call_operand.vmem [shape: f32[1,128], index: 17, kind: input, shape index: {}]
  %s18 = inlined_call_operand.hbm [shape: f32[128,256], index: 18, kind: input, shape index: {}]
  %s19 = inlined_call_operand.vmem [shape: f32[1,256], index: 19, kind: input, shape index: {}]
  %s20 = inlined_call_operand.hbm [shape: f32[8,256], index: 20, kind: output, shape index: {}]
  %s21 = sld [smem:[#allocation0]]
  $region122: #{tpu_custom_call.1} parent=0
    _
  %s23 = ssub.s32 1, %s21
  %s24 = scalar_select 0, %s23, %s21
  $region1: #{tpu_custom_call.1} parent=0
    #allocation2 [shape = 'u8[8192]{0}', space=vmem, size = 0x2000, scoped, tag = 'input window, operand 0, single buffered']
    #allocation3 [shape = 's32[1]{0}', space=sflag, size = 0x4, scoped, tag = 'scoped memory for tpu_custom_call.1']
    #allocation4 [shape = 's32[1]{0}', space=sflag, size = 0x4, scoped, tag = 'scoped memory for tpu_custom_call.1']
    #allocation5 [shape = 'u8[4096]{0}', space=vmem, size = 0x1000, scoped, tag = 'input window, operand 1, single buffered']
    #allocation6 [shape = 's32[1]{0}', space=sflag, size = 0x4, scoped, tag = 'scoped memory for tpu_custom_call.1']
    #allocation7 [shape = 'u8[512]{0}', space=vmem, size = 0x400, scoped, tag = 'input window, operand 3, single buffered']
    #allocation8 [shape = 'u8[65536]{0}', space=vmem, size = 0x10000, scoped, tag = 'input window, operand 4, single buffered']
    #allocation9 [shape = 's32[1]{0}', space=sflag, size = 0x4, scoped, tag = 'scoped memory for tpu_custom_call.1']
    #allocation10 [shape = 'u8[512]{0}', space=vmem, size = 0x400, scoped, tag = 'input window, operand 5, single buffered']
    #allocation11 [shape = 'u8[65536]{0}', space=vmem, size = 0x10000, scoped, tag = 'input window, operand 10, single buffered']
    #allocation12 [shape = 's32[1]{0}', space=sflag, size = 0x4, scoped, tag = 'scoped memory for tpu_custom_call.1']
    #allocation13 [shape = 'u8[65536]{0}', space=vmem, size = 0x10000, scoped, tag = 'input window, operand 16, single buffered']
    #allocation14 [shape = 'u8[131072]{0}', space=vmem, size = 0x20000, scoped, tag = 'input window, operand 18, single buffered']
    #allocation15 [shape = 's32[1]{0}', space=sflag, size = 0x4, scoped, tag = 'scoped memory for tpu_custom_call.1']
    #allocation16 [shape = 'u8[8192]{0}', space=vmem, size = 0x2000, scoped, tag = 'output window, operand 0, single buffered']
    %25 = vsyncpa [#allocation3], 0
    %26 = vsyncpa [#allocation6], 0
    %27 = vsyncpa [#allocation9], 0
    %28 = vsyncpa [#allocation12], 0
    %29 = vsyncpa [#allocation15], 0
    %30 = vsyncpa [#allocation4], 0
    // Predicated region
    $region2: #{tpu_custom_call.1} parent=1 // pred_check
      _
    $region3: #{tpu_custom_call.1} parent=1 // pred_check_branch
      %32 = sbr.rel (0) target = $region5
    $region4: #{tpu_custom_call.1} parent=1 // pred_region
      %s34 = ssub.s32 256, 256
      %35 = vsyncadd [#allocation3], %s34
      %s37 = sshll.u32 [#allocation2], 4
      %s38 = int_to_ptr.vmem [resolvable:$true] %s37
      %40 = dma.hbm_to_vmem [thread:$0]  %s0, 256, %s38, [#allocation3]
    $region5: #{tpu_custom_call.1} parent=1 // pred_fallthru
      _
    // Predicated region
    $region6: #{tpu_custom_call.1} parent=1 // pred_check
      _
    $region7: #{tpu_custom_call.1} parent=1 // pred_check_branch
      %42 = sbr.rel (0) target = $region9
    $region8: #{tpu_custom_call.1} parent=1 // pred_region
      %s44 = ssub.s32 128, 128
      %45 = vsyncadd [#allocation6], %s44
      %s47 = sshll.u32 [#allocation5], 4
      %s48 = int_to_ptr.vmem [resolvable:$true] %s47
      %50 = dma.hbm_to_vmem [thread:$0]  %s1, 128, %s48, [#allocation6]
    $region9: #{tpu_custom_call.1} parent=1 // pred_fallthru
      _
    // Predicated region
    $region10: #{tpu_custom_call.1} parent=1 // pred_check
      _
    $region11: #{tpu_custom_call.1} parent=1 // pred_check_branch
      %52 = sbr.rel (0) target = $region13
    $region12: #{tpu_custom_call.1} parent=1 // pred_region
      _
    $region13: #{tpu_custom_call.1} parent=1 // pred_fallthru
      _
    // Predicated region
    $region14: #{tpu_custom_call.1} parent=1 // pred_check
      _
    $region15: #{tpu_custom_call.1} parent=1 // pred_check_branch
      %54 = sbr.rel (0) target = $region17
    $region16: #{tpu_custom_call.1} parent=1 // pred_region
      %s56 = ssub.s32 16, 16
      %57 = vsyncadd [#allocation6], %s56
      %s59 = sshll.u32 [#allocation7], 4
      %s60 = int_to_ptr.vmem [resolvable:$true] %s59
      %62 = dma.hbm_to_vmem [thread:$0]  %s3, 16, %s60, [#allocation6]
    $region17: #{tpu_custom_call.1} parent=1 // pred_fallthru
      _
    // Predicated region
    $region18: #{tpu_custom_call.1} parent=1 // pred_check
      _
    $region19: #{tpu_custom_call.1} parent=1 // pred_check_branch
      %64 = sbr.rel (0) target = $region21
    $region20: #{tpu_custom_call.1} parent=1 // pred_region
      %s66 = ssub.s32 2048, 2048
      %67 = vsyncadd [#allocation9], %s66
      %s68 = sshll.u32 [#allocation8], 4
      %s69 = int_to_ptr.vmem [resolvable:$true] %s68
      %74 = dma.hbm_to_vmem [thread:$0]  %s4, 2048, %s69, [#allocation9], 128, 128, 8
    $region21: #{tpu_custom_call.1} parent=1 // pred_fallthru
      _
    // Predicated region
    $region22: #{tpu_custom_call.1} parent=1 // pred_check
      _
    $region23: #{tpu_custom_call.1} parent=1 // pred_check_branch
      %76 = sbr.rel (0) target = $region25
    $region24: #{tpu_custom_call.1} parent=1 // pred_region
      %s78 = ssub.s32 16, 16
      %79 = vsyncadd [#allocation9], %s78
      %s81 = sshll.u32 [#allocation10], 4
      %s82 = int_to_ptr.vmem [resolvable:$true] %s81
      %84 = dma.hbm_to_vmem [thread:$0]  %s5, 16, %s82, [#allocation9]
    $region25: #{tpu_custom_call.1} parent=1 // pred_fallthru
      _
    // Predicated region
    $region26: #{tpu_custom_call.1} parent=1 // pred_check
      _
    $region27: #{tpu_custom_call.1} parent=1 // pred_check_branch
      %86 = sbr.rel (0) target = $region29
    $region28: #{tpu_custom_call.1} parent=1 // pred_region
      _
    $region29: #{tpu_custom_call.1} parent=1 // pred_fallthru
      _
    // Predicated region
    $region30: #{tpu_custom_call.1} parent=1 // pred_check
      _
    $region31: #{tpu_custom_call.1} parent=1 // pred_check_branch
      %88 = sbr.rel (0) target = $region33
    $region32: #{tpu_custom_call.1} parent=1 // pred_region
      _
    $region33: #{tpu_custom_call.1} parent=1 // pred_fallthru
      _
    // Predicated region
    $region34: #{tpu_custom_call.1} parent=1 // pred_check
      _
    $region35: #{tpu_custom_call.1} parent=1 // pred_check_branch
      %90 = sbr.rel (0) target = $region37
    $region36: #{tpu_custom_call.1} parent=1 // pred_region
      _
    $region37: #{tpu_custom_call.1} parent=1 // pred_fallthru
      _
    // Predicated region
    $region38: #{tpu_custom_call.1} parent=1 // pred_check
      _
    $region39: #{tpu_custom_call.1} parent=1 // pred_check_branch
      %92 = sbr.rel (0) target = $region41
    $region40: #{tpu_custom_call.1} parent=1 // pred_region
      _
    $region41: #{tpu_custom_call.1} parent=1 // pred_fallthru
      _
    // Predicated region
    $region42: #{tpu_custom_call.1} parent=1 // pred_check
      _
    $region43: #{tpu_custom_call.1} parent=1 // pred_check_branch
      %94 = sbr.rel (0) target = $region45
    $region44: #{tpu_custom_call.1} parent=1 // pred_region
      %s96 = ssub.s32 2048, 2048
      %97 = vsyncadd [#allocation12], %s96
      %s98 = sshll.u32 [#allocation11], 4
      %s99 = int_to_ptr.vmem [resolvable:$true] %s98
      %104 = dma.hbm_to_vmem [thread:$0]  %s10, 2048, %s99, [#allocation12], 128, 128, 8
    $region45: #{tpu_custom_call.1} parent=1 // pred_fallthru
      _
    // Predicated region
    $region46: #{tpu_custom_call.1} parent=1 // pred_check
      _
    $region47: #{tpu_custom_call.1} parent=1 // pred_check_branch
      %106 = sbr.rel (0) target = $region49
    $region48: #{tpu_custom_call.1} parent=1 // pred_region
      _
    $region49: #{tpu_custom_call.1} parent=1 // pred_fallthru
      _
    // Predicated region
    $region50: #{tpu_custom_call.1} parent=1 // pred_check
      _
    $region51: #{tpu_custom_call.1} parent=1 // pred_check_branch
      %108 = sbr.rel (0) target = $region53
    $region52: #{tpu_custom_call.1} parent=1 // pred_region
      _
    $region53: #{tpu_custom_call.1} parent=1 // pred_fallthru
      _
    // Predicated region
    $region54: #{tpu_custom_call.1} parent=1 // pred_check
      _
    $region55: #{tpu_custom_call.1} parent=1 // pred_check_branch
      %110 = sbr.rel (0) target = $region57
    $region56: #{tpu_custom_call.1} parent=1 // pred_region
      _
    $region57: #{tpu_custom_call.1} parent=1 // pred_fallthru
      _
    // Predicated region
    $region58: #{tpu_custom_call.1} parent=1 // pred_check
      _
    $region59: #{tpu_custom_call.1} parent=1 // pred_check_branch
      %112 = sbr.rel (0) target = $region61
    $region60: #{tpu_custom_call.1} parent=1 // pred_region
      _
    $region61: #{tpu_custom_call.1} parent=1 // pred_fallthru
      _
    // Predicated region
    $region62: #{tpu_custom_call.1} parent=1 // pred_check
      _
    $region63: #{tpu_custom_call.1} parent=1 // pred_check_branch
      %114 = sbr.rel (0) target = $region65
    $region64: #{tpu_custom_call.1} parent=1 // pred_region
      _
    $region65: #{tpu_custom_call.1} parent=1 // pred_fallthru
      _
    // Predicated region
    $region66: #{tpu_custom_call.1} parent=1 // pred_check
      _
    $region67: #{tpu_custom_call.1} parent=1 // pred_check_branch
      %116 = sbr.rel (0) target = $region69
    $region68: #{tpu_custom_call.1} parent=1 // pred_region
      %s118 = ssub.s32 2048, 2048
      %119 = vsyncadd [#allocation12], %s118
      %s120 = sshll.u32 [#allocation13], 4
      %s121 = int_to_ptr.vmem [resolvable:$true] %s120
      %126 = dma.hbm_to_vmem [thread:$0]  %s16, 2048, %s121, [#allocation12], 128, 128, 8
    $region69: #{tpu_custom_call.1} parent=1 // pred_fallthru
      _
    // Predicated region
    $region70: #{tpu_custom_call.1} parent=1 // pred_check
      _
    $region71: #{tpu_custom_call.1} parent=1 // pred_check_branch
      %128 = sbr.rel (0) target = $region73
    $region72: #{tpu_custom_call.1} parent=1 // pred_region
      _
    $region73: #{tpu_custom_call.1} parent=1 // pred_fallthru
      _
    // Predicated region
    $region74: #{tpu_custom_call.1} parent=1 // pred_check
      _
    $region75: #{tpu_custom_call.1} parent=1 // pred_check_branch
      %130 = sbr.rel (0) target = $region77
    $region76: #{tpu_custom_call.1} parent=1 // pred_region
      %s132 = ssub.s32 4096, 4096
      %133 = vsyncadd [#allocation15], %s132
      %s134 = sshll.u32 [#allocation14], 4
      %s135 = int_to_ptr.vmem [resolvable:$true] %s134
      %140 = dma.hbm_to_vmem [thread:$0]  %s18, 4096, %s135, [#allocation15], 256, 256, 16
    $region77: #{tpu_custom_call.1} parent=1 // pred_fallthru
      _
    // Predicated region
    $region78: #{tpu_custom_call.1} parent=1 // pred_check
      _
    $region79: #{tpu_custom_call.1} parent=1 // pred_check_branch
      %142 = sbr.rel (0) target = $region81
    $region80: #{tpu_custom_call.1} parent=1 // pred_region
      _
    $region81: #{tpu_custom_call.1} parent=1 // pred_fallthru
      _
    // Predicated region
    $region82: #{tpu_custom_call.1} parent=1 // pred_check
      _
    $region83: #{tpu_custom_call.1} parent=1 // pred_check_branch
      %144 = sbr.rel (0) target = $region85
    $region84: #{tpu_custom_call.1} parent=1 // pred_region
      %145 = dma.done [#allocation3], 256
    $region85: #{tpu_custom_call.1} parent=1 // pred_fallthru
      _
    // Predicated region
    $region86: #{tpu_custom_call.1} parent=1 // pred_check
      _
    $region87: #{tpu_custom_call.1} parent=1 // pred_check_branch
      %147 = sbr.rel (0) target = $region89
    $region88: #{tpu_custom_call.1} parent=1 // pred_region
      %148 = dma.done [#allocation6], 128
    $region89: #{tpu_custom_call.1} parent=1 // pred_fallthru
      _
    // Predicated region
    $region90: #{tpu_custom_call.1} parent=1 // pred_check
      _
    $region91: #{tpu_custom_call.1} parent=1 // pred_check_branch
      %150 = sbr.rel (0) target = $region93
    $region92: #{tpu_custom_call.1} parent=1 // pred_region
      %151 = dma.done [#allocation6], 16
    $region93: #{tpu_custom_call.1} parent=1 // pred_fallthru
      _
    // Predicated region
    $region94: #{tpu_custom_call.1} parent=1 // pred_check
      _
    $region95: #{tpu_custom_call.1} parent=1 // pred_check_branch
      %153 = sbr.rel (0) target = $region97
    $region96: #{tpu_custom_call.1} parent=1 // pred_region
      %154 = dma.done [#allocation9], 2048
    $region97: #{tpu_custom_call.1} parent=1 // pred_fallthru
      _
    // Predicated region
    $region98: #{tpu_custom_call.1} parent=1 // pred_check
      _
    $region99: #{tpu_custom_call.1} parent=1 // pred_check_branch
      %156 = sbr.rel (0) target = $region101
    $region100: #{tpu_custom_call.1} parent=1 // pred_region
      %157 = dma.done [#allocation9], 16
    $region101: #{tpu_custom_call.1} parent=1 // pred_fallthru
      _
    // Predicated region
    $region102: #{tpu_custom_call.1} parent=1 // pred_check
      _
    $region103: #{tpu_custom_call.1} parent=1 // pred_check_branch
      %159 = sbr.rel (0) target = $region105
    $region104: #{tpu_custom_call.1} parent=1 // pred_region
      %160 = dma.done [#allocation12], 2048
    $region105: #{tpu_custom_call.1} parent=1 // pred_fallthru
      _
    // Predicated region
    $region106: #{tpu_custom_call.1} parent=1 // pred_check
      _
    $region107: #{tpu_custom_call.1} parent=1 // pred_check_branch
      %162 = sbr.rel (0) target = $region109
    $region108: #{tpu_custom_call.1} parent=1 // pred_region
      %163 = dma.done [#allocation12], 2048
    $region109: #{tpu_custom_call.1} parent=1 // pred_fallthru
      _
    // Predicated region
    $region110: #{tpu_custom_call.1} parent=1 // pred_check
      _
    $region111: #{tpu_custom_call.1} parent=1 // pred_check_branch
      %165 = sbr.rel (0) target = $region113
    $region112: #{tpu_custom_call.1} parent=1 // pred_region
      %166 = dma.done [#allocation15], 4096
    $region113: #{tpu_custom_call.1} parent=1 // pred_fallthru
      _
    %v167 = vld [vmem:[#allocation2] sm:$0xff]
    %v168 = vld [vmem:[#allocation2 + $0x8] sm:$0xff]
    %v169 = vld [vmem:[%s2] sm:$0xff]
    %v170 = vld [vmem:[%s2 + $0x8] sm:$0xff]
    %v171 = vld [vmem:[%s2 + $0x10] sm:$0xff]
    %v172 = vld [vmem:[%s2 + $0x18] sm:$0xff]
    %v173 = vld [vmem:[%s2 + $0x20] sm:$0xff]
    %v174 = vld [vmem:[%s2 + $0x28] sm:$0xff]
    %v175 = vld [vmem:[%s2 + $0x30] sm:$0xff]
    %v176 = vld [vmem:[%s2 + $0x38] sm:$0xff]
    %v177 = vld [vmem:[%s2 + $0x40] sm:$0xff]
    %v178 = vld [vmem:[%s2 + $0x48] sm:$0xff]
    %v179 = vld [vmem:[%s2 + $0x50] sm:$0xff]
    %v180 = vld [vmem:[%s2 + $0x58] sm:$0xff]
    %v181 = vld [vmem:[%s2 + $0x60] sm:$0xff]
    %v182 = vld [vmem:[%s2 + $0x68] sm:$0xff]
    %v183 = vld [vmem:[%s2 + $0x70] sm:$0xff]
    %v184 = vld [vmem:[%s2 + $0x78] sm:$0xff]
    %v185 = vld [vmem:[%s2 + $0x80] sm:$0xff]
    %v186 = vld [vmem:[%s2 + $0x88] sm:$0xff]
    %v187 = vld [vmem:[%s2 + $0x90] sm:$0xff]
    %v188 = vld [vmem:[%s2 + $0x98] sm:$0xff]
    %v189 = vld [vmem:[%s2 + $0xa0] sm:$0xff]
    %v190 = vld [vmem:[%s2 + $0xa8] sm:$0xff]
    %v191 = vld [vmem:[%s2 + $0xb0] sm:$0xff]
    %v192 = vld [vmem:[%s2 + $0xb8] sm:$0xff]
    %v193 = vld [vmem:[%s2 + $0xc0] sm:$0xff]
    %v194 = vld [vmem:[%s2 + $0xc8] sm:$0xff]
    %v195 = vld [vmem:[%s2 + $0xd0] sm:$0xff]
    %v196 = vld [vmem:[%s2 + $0xd8] sm:$0xff]
    %v197 = vld [vmem:[%s2 + $0xe0] sm:$0xff]
    %v198 = vld [vmem:[%s2 + $0xe8] sm:$0xff]
    %v199 = vld [vmem:[%s2 + $0xf0] sm:$0xff]
    %v200 = vld [vmem:[%s2 + $0xf8] sm:$0xff]
    %v201 = vld [vmem:[#allocation7] sm:$0x1]
    %v202 = vld [vmem:[#allocation8] sm:$0xff]
    %v203 = vld [vmem:[#allocation8 + $0x8] sm:$0xff]
    %v204 = vld [vmem:[#allocation8 + $0x10] sm:$0xff]
    %v205 = vld [vmem:[#allocation8 + $0x18] sm:$0xff]
    %v206 = vld [vmem:[#allocation8 + $0x20] sm:$0xff]
    %v207 = vld [vmem:[#allocation8 + $0x28] sm:$0xff]
    %v208 = vld [vmem:[#allocation8 + $0x30] sm:$0xff]
    %v209 = vld [vmem:[#allocation8 + $0x38] sm:$0xff]
    %v210 = vld [vmem:[#allocation8 + $0x40] sm:$0xff]
    %v211 = vld [vmem:[#allocation8 + $0x48] sm:$0xff]
    %v212 = vld [vmem:[#allocation8 + $0x50] sm:$0xff]
    %v213 = vld [vmem:[#allocation8 + $0x58] sm:$0xff]
    %v214 = vld [vmem:[#allocation8 + $0x60] sm:$0xff]
    %v215 = vld [vmem:[#allocation8 + $0x68] sm:$0xff]
    %v216 = vld [vmem:[#allocation8 + $0x70] sm:$0xff]
    %v217 = vld [vmem:[#allocation8 + $0x78] sm:$0xff]
    %v218 = vld [vmem:[#allocation10] sm:$0x1]
    %v219 = vld [vmem:[%s6] sm:$0xff]
    %v220 = vld [vmem:[%s6 + $0x8] sm:$0xff]
    %v221 = vld [vmem:[%s6 + $0x10] sm:$0xff]
    %v222 = vld [vmem:[%s6 + $0x18] sm:$0xff]
    %v223 = vld [vmem:[%s6 + $0x20] sm:$0xff]
    %v224 = vld [vmem:[%s6 + $0x28] sm:$0xff]
    %v225 = vld [vmem:[%s6 + $0x30] sm:$0xff]
    %v226 = vld [vmem:[%s6 + $0x38] sm:$0xff]
    %v227 = vld [vmem:[%s6 + $0x40] sm:$0xff]
    %v228 = vld [vmem:[%s6 + $0x48] sm:$0xff]
    %v229 = vld [vmem:[%s6 + $0x50] sm:$0xff]
    %v230 = vld [vmem:[%s6 + $0x58] sm:$0xff]
    %v231 = vld [vmem:[%s6 + $0x60] sm:$0xff]
    %v232 = vld [vmem:[%s6 + $0x68] sm:$0xff]
    %v233 = vld [vmem:[%s6 + $0x70] sm:$0xff]
    %v234 = vld [vmem:[%s6 + $0x78] sm:$0xff]
    %v235 = vld [vmem:[%s7] sm:$0x1]
    %v237 = vlaneseq
    %v238 = vshrl.u32 %v237, 7
    %v239 = vsub.s32 0, %v238
    %v240 = vrot.slane %v201, %v239
    %242 = vmatprep.subr.mxu0 0.0
    %243 = vmatpush1.msra.mxu0 %v169
    %244 = vmatprep.subr.mxu0 0.0
    %245 = vmatpush1.msra.mxu0 %v170
    %246 = vmatprep.subr.mxu0 0.0
    %247 = vmatpush1.msra.mxu0 %v171
    %248 = vmatprep.subr.mxu0 0.0
    %249 = vmatpush1.msra.mxu0 %v172
    %250 = vmatprep.subr.mxu0 0.0
    %251 = vmatpush1.msra.mxu0 %v173
    %252 = vmatprep.subr.mxu0 0.0
    %253 = vmatpush1.msra.mxu0 %v174
    %254 = vmatprep.subr.mxu0 0.0
    %255 = vmatpush1.msra.mxu0 %v175
    %256 = vmatprep.subr.mxu0 0.0
    %257 = vmatpush1.msra.mxu0 %v176
    %258 = vmatprep.subr.mxu0 0.0
    %259 = vmatpush1.msra.mxu0 %v177
    %260 = vmatprep.subr.mxu0 0.0
    %261 = vmatpush1.msra.mxu0 %v178
    %262 = vmatprep.subr.mxu0 0.0
    %263 = vmatpush1.msra.mxu0 %v179
    %264 = vmatprep.subr.mxu0 0.0
    %265 = vmatpush1.msra.mxu0 %v180
    %266 = vmatprep.subr.mxu0 0.0
    %267 = vmatpush1.msra.mxu0 %v181
    %268 = vmatprep.subr.mxu0 0.0
    %269 = vmatpush1.msra.mxu0 %v182
    %270 = vmatprep.subr.mxu0 0.0
    %271 = vmatpush1.msra.mxu0 %v183
    %272 = vmatprep.subr.mxu0 0.0
    %273 = vmatpush1.msra.mxu0 %v184
    %274 = vmatprep.subr.mxu0 0.0
    %275 = vmatpush1.msra.mxu0 %v185
    %276 = vmatprep.subr.mxu0 0.0
    %277 = vmatpush1.msra.mxu0 %v186
    %278 = vmatprep.subr.mxu0 0.0
    %279 = vmatpush1.msra.mxu0 %v187
    %280 = vmatprep.subr.mxu0 0.0
    %281 = vmatpush1.msra.mxu0 %v188
    %282 = vmatprep.subr.mxu0 0.0
    %283 = vmatpush1.msra.mxu0 %v189
    %284 = vmatprep.subr.mxu0 0.0
    %285 = vmatpush1.msra.mxu0 %v190
    %286 = vmatprep.subr.mxu0 0.0
    %287 = vmatpush1.msra.mxu0 %v191
    %288 = vmatprep.subr.mxu0 0.0
    %289 = vmatpush1.msra.mxu0 %v192
    %290 = vmatprep.subr.mxu0 0.0
    %291 = vmatpush1.msra.mxu0 %v193
    %292 = vmatprep.subr.mxu0 0.0
    %293 = vmatpush1.msra.mxu0 %v194
    %294 = vmatprep.subr.mxu0 0.0
    %295 = vmatpush1.msra.mxu0 %v195
    %296 = vmatprep.subr.mxu0 0.0
    %297 = vmatpush1.msra.mxu0 %v196
    %298 = vmatprep.subr.mxu0 0.0
    %299 = vmatpush1.msra.mxu0 %v197
    %300 = vmatprep.subr.mxu0 0.0
    %301 = vmatpush1.msra.mxu0 %v198
    %302 = vmatprep.subr.mxu0 0.0
    %303 = vmatpush1.msra.mxu0 %v199
    %304 = vmatprep.subr.mxu0 0.0
    %305 = vmatpush1.msra.mxu0 %v200
    %306 = vmatprep.mubr.f32.mxu0 %v168
    %307 = vmatmul.mubr.f32.gmra.mrb[0].mxu0 %v167
    %v308 = vpop.f32.mrb[0].mxu0
    %v309 = vadd.f32 %v240, %v308
    %v310 = vpop.f32.mrb[0].mxu0
    %311 = vdwg.mxu0
    %312 = vadd.xlane.f32.xlu0 %v309
    %v313 = vpop.xlane.xlu0 %312
    %v314 = vrcp.pop 128.0
    %v315 = vmul.f32 %v313, %v314
    %v316 = vsub.f32 %v309, %v315
    %v317 = vmul.f32 %v316, %v316
    %318 = vadd.xlane.f32.xlu0 %v317
    %v319 = vpop.xlane.xlu0 %318
    %v320 = vmul.f32 %v319, %v314
    %v321 = vadd.f32 %v320, 1e-05
    %v322 = vrsqrt.pop %v321
    %v323 = vmul.f32 %v316, %v322
    %v324 = vmax.f32 %v323, 0.0
    %v326 = vlaneseq
    %v327 = vshrl.u32 %v326, 7
    %v328 = vsub.s32 0, %v327
    %v329 = vrot.slane %v218, %v328
    %331 = vmatprep.subr.mxu0 0.0
    %332 = vmatpush1.msra.mxu0 %v202
    %333 = vmatprep.subr.mxu0 0.0
    %334 = vmatpush1.msra.mxu0 %v203
    %335 = vmatprep.subr.mxu0 0.0
    %336 = vmatpush1.msra.mxu0 %v204
    %337 = vmatprep.subr.mxu0 0.0
    %338 = vmatpush1.msra.mxu0 %v205
    %339 = vmatprep.subr.mxu0 0.0
    %340 = vmatpush1.msra.mxu0 %v206
    %341 = vmatprep.subr.mxu0 0.0
    %342 = vmatpush1.msra.mxu0 %v207
    %343 = vmatprep.subr.mxu0 0.0
    %344 = vmatpush1.msra.mxu0 %v208
    %345 = vmatprep.subr.mxu0 0.0
    %346 = vmatpush1.msra.mxu0 %v209
    %347 = vmatprep.subr.mxu0 0.0
    %348 = vmatpush1.msra.mxu0 %v210
    %349 = vmatprep.subr.mxu0 0.0
    %350 = vmatpush1.msra.mxu0 %v211
    %351 = vmatprep.subr.mxu0 0.0
    %352 = vmatpush1.msra.mxu0 %v212
    %353 = vmatprep.subr.mxu0 0.0
    %354 = vmatpush1.msra.mxu0 %v213
    %355 = vmatprep.subr.mxu0 0.0
    %356 = vmatpush1.msra.mxu0 %v214
    %357 = vmatprep.subr.mxu0 0.0
    %358 = vmatpush1.msra.mxu0 %v215
    %359 = vmatprep.subr.mxu0 0.0
    %360 = vmatpush1.msra.mxu0 %v216
    %361 = vmatprep.subr.mxu0 0.0
    %362 = vmatpush1.msra.mxu0 %v217
    %363 = vmatprep.subr.mxu0 0.0
    %364 = vmatpush1.msra.mxu0 0.0
    %365 = vmatprep.subr.mxu0 0.0
    %366 = vmatpush1.msra.mxu0 0.0
    %367 = vmatprep.subr.mxu0 0.0
    %368 = vmatpush1.msra.mxu0 0.0
    %369 = vmatprep.subr.mxu0 0.0
    %370 = vmatpush1.msra.mxu0 0.0
    %371 = vmatprep.subr.mxu0 0.0
    %372 = vmatpush1.msra.mxu0 0.0
    %373 = vmatprep.subr.mxu0 0.0
    %374 = vmatpush1.msra.mxu0 0.0
    %375 = vmatprep.subr.mxu0 0.0
    %376 = vmatpush1.msra.mxu0 0.0
    %377 = vmatprep.subr.mxu0 0.0
    %378 = vmatpush1.msra.mxu0 0.0
    %379 = vmatprep.subr.mxu0 0.0
    %380 = vmatpush1.msra.mxu0 0.0
    %381 = vmatprep.subr.mxu0 0.0
    %382 = vmatpush1.msra.mxu0 0.0
    %383 = vmatprep.subr.mxu0 0.0
    %384 = vmatpush1.msra.mxu0 0.0
    %385 = vmatprep.subr.mxu0 0.0
    %386 = vmatpush1.msra.mxu0 0.0
    %387 = vmatprep.subr.mxu0 0.0
    %388 = vmatpush1.msra.mxu0 0.0
    %389 = vmatprep.subr.mxu0 0.0
    %390 = vmatpush1.msra.mxu0 0.0
    %391 = vmatprep.subr.mxu0 0.0
    %392 = vmatpush1.msra.mxu0 0.0
    %393 = vmatprep.subr.mxu0 0.0
    %394 = vmatpush1.msra.mxu0 0.0
    %395 = vmatprep.mubr.f32.mxu0 0.0
    %396 = vmatmul.mubr.f32.gmra.mrb[0].mxu0 %v324
    %v397 = vpop.f32.mrb[0].mxu0
    %v398 = vadd.f32 %v329, %v397
    %v399 = vpop.f32.mrb[0].mxu0
    %400 = vdwg.mxu0
    %401 = vadd.xlane.f32.xlu0 %v398
    %v402 = vpop.xlane.xlu0 %401
    %v403 = vmul.f32 %v402, %v314
    %v404 = vsub.f32 %v398, %v403
    %v405 = vmul.f32 %v404, %v404
    %406 = vadd.xlane.f32.xlu0 %v405
    %v407 = vpop.xlane.xlu0 %406
    %v408 = vmul.f32 %v407, %v314
    %v409 = vadd.f32 %v408, 1e-05
    %v410 = vrsqrt.pop %v409
    %v411 = vmul.f32 %v404, %v410
    %v412 = vmax.f32 %v411, 0.0
    %v414 = vlaneseq
    %v415 = vshrl.u32 %v414, 7
    %v416 = vsub.s32 0, %v415
    %v417 = vrot.slane %v235, %v416
    %419 = vmatprep.subr.mxu0 0.0
    %420 = vmatpush1.msra.mxu0 %v219
    %421 = vmatprep.subr.mxu0 0.0
    %422 = vmatpush1.msra.mxu0 %v220
    %423 = vmatprep.subr.mxu0 0.0
    %424 = vmatpush1.msra.mxu0 %v221
    %425 = vmatprep.subr.mxu0 0.0
    %426 = vmatpush1.msra.mxu0 %v222
    %427 = vmatprep.subr.mxu0 0.0
    %428 = vmatpush1.msra.mxu0 %v223
    %429 = vmatprep.subr.mxu0 0.0
    %430 = vmatpush1.msra.mxu0 %v224
    %431 = vmatprep.subr.mxu0 0.0
    %432 = vmatpush1.msra.mxu0 %v225
    %433 = vmatprep.subr.mxu0 0.0
    %434 = vmatpush1.msra.mxu0 %v226
    %435 = vmatprep.subr.mxu0 0.0
    %436 = vmatpush1.msra.mxu0 %v227
    %437 = vmatprep.subr.mxu0 0.0
    %438 = vmatpush1.msra.mxu0 %v228
    %439 = vmatprep.subr.mxu0 0.0
    %440 = vmatpush1.msra.mxu0 %v229
    %441 = vmatprep.subr.mxu0 0.0
    %442 = vmatpush1.msra.mxu0 %v230
    %443 = vmatprep.subr.mxu0 0.0
    %444 = vmatpush1.msra.mxu0 %v231
    %445 = vmatprep.subr.mxu0 0.0
    %446 = vmatpush1.msra.mxu0 %v232
    %447 = vmatprep.subr.mxu0 0.0
    %448 = vmatpush1.msra.mxu0 %v233
    %449 = vmatprep.subr.mxu0 0.0
    %450 = vmatpush1.msra.mxu0 %v234
    %451 = vmatprep.subr.mxu0 0.0
    %452 = vmatpush1.msra.mxu0 0.0
    %453 = vmatprep.subr.mxu0 0.0
    %454 = vmatpush1.msra.mxu0 0.0
    %455 = vmatprep.subr.mxu0 0.0
    %456 = vmatpush1.msra.mxu0 0.0
    %457 = vmatprep.subr.mxu0 0.0
    %458 = vmatpush1.msra.mxu0 0.0
    %459 = vmatprep.subr.mxu0 0.0
    %460 = vmatpush1.msra.mxu0 0.0
    %461 = vmatprep.subr.mxu0 0.0
    %462 = vmatpush1.msra.mxu0 0.0
    %463 = vmatprep.subr.mxu0 0.0
    %464 = vmatpush1.msra.mxu0 0.0
    %465 = vmatprep.subr.mxu0 0.0
    %466 = vmatpush1.msra.mxu0 0.0
    %467 = vmatprep.subr.mxu0 0.0
    %468 = vmatpush1.msra.mxu0 0.0
    %469 = vmatprep.subr.mxu0 0.0
    %470 = vmatpush1.msra.mxu0 0.0
    %471 = vmatprep.subr.mxu0 0.0
    %472 = vmatpush1.msra.mxu0 0.0
    %473 = vmatprep.subr.mxu0 0.0
    %474 = vmatpush1.msra.mxu0 0.0
    %475 = vmatprep.subr.mxu0 0.0
    %476 = vmatpush1.msra.mxu0 0.0
    %477 = vmatprep.subr.mxu0 0.0
    %478 = vmatpush1.msra.mxu0 0.0
    %479 = vmatprep.subr.mxu0 0.0
    %480 = vmatpush1.msra.mxu0 0.0
    %481 = vmatprep.subr.mxu0 0.0
    %482 = vmatpush1.msra.mxu0 0.0
    %483 = vmatprep.mubr.f32.mxu0 0.0
    %484 = vmatmul.mubr.f32.gmra.mrb[0].mxu0 %v412
    %v485 = vpop.f32.mrb[0].mxu0
    %v486 = vadd.f32 %v417, %v485
    %v487 = vpop.f32.mrb[0].mxu0
    %488 = vdwg.mxu0
    %v489 = vld [vmem:[#allocation5] sm:$0xff]
    %v490 = vld [vmem:[%s8] sm:$0xff]
    %v491 = vld [vmem:[%s8 + $0x8] sm:$0xff]
    %v492 = vld [vmem:[%s9] sm:$0x1]
    %v493 = vld [vmem:[#allocation11] sm:$0xff]
    %v494 = vld [vmem:[#allocation11 + $0x8] sm:$0xff]
    %v495 = vld [vmem:[#allocation11 + $0x10] sm:$0xff]
    %v496 = vld [vmem:[#allocation11 + $0x18] sm:$0xff]
    %v497 = vld [vmem:[#allocation11 + $0x20] sm:$0xff]
    %v498 = vld [vmem:[#allocation11 + $0x28] sm:$0xff]
    %v499 = vld [vmem:[#allocation11 + $0x30] sm:$0xff]
    %v500 = vld [vmem:[#allocation11 + $0x38] sm:$0xff]
    %v501 = vld [vmem:[#allocation11 + $0x40] sm:$0xff]
    %v502 = vld [vmem:[#allocation11 + $0x48] sm:$0xff]
    %v503 = vld [vmem:[#allocation11 + $0x50] sm:$0xff]
    %v504 = vld [vmem:[#allocation11 + $0x58] sm:$0xff]
    %v505 = vld [vmem:[#allocation11 + $0x60] sm:$0xff]
    %v506 = vld [vmem:[#allocation11 + $0x68] sm:$0xff]
    %v507 = vld [vmem:[#allocation11 + $0x70] sm:$0xff]
    %v508 = vld [vmem:[#allocation11 + $0x78] sm:$0xff]
    %v509 = vld [vmem:[%s11] sm:$0x1]
    %v510 = vld [vmem:[%s12] sm:$0xff]
    %v511 = vld [vmem:[%s12 + $0x8] sm:$0xff]
    %v512 = vld [vmem:[%s12 + $0x10] sm:$0xff]
    %v513 = vld [vmem:[%s12 + $0x18] sm:$0xff]
    %v514 = vld [vmem:[%s12 + $0x20] sm:$0xff]
    %v515 = vld [vmem:[%s12 + $0x28] sm:$0xff]
    %v516 = vld [vmem:[%s12 + $0x30] sm:$0xff]
    %v517 = vld [vmem:[%s12 + $0x38] sm:$0xff]
    %v518 = vld [vmem:[%s12 + $0x40] sm:$0xff]
    %v519 = vld [vmem:[%s12 + $0x48] sm:$0xff]
    %v520 = vld [vmem:[%s12 + $0x50] sm:$0xff]
    %v521 = vld [vmem:[%s12 + $0x58] sm:$0xff]
    %v522 = vld [vmem:[%s12 + $0x60] sm:$0xff]
    %v523 = vld [vmem:[%s12 + $0x68] sm:$0xff]
    %v524 = vld [vmem:[%s12 + $0x70] sm:$0xff]
    %v525 = vld [vmem:[%s12 + $0x78] sm:$0xff]
    %v526 = vld [vmem:[%s13] sm:$0x1]
    %v528 = vlaneseq
    %v529 = vshrl.u32 %v528, 7
    %v530 = vsub.s32 0, %v529
    %v531 = vrot.slane %v492, %v530
    %vm533 = vcmask 130048
    %v535 = vsel %vm533, %v489, 0
    %537 = vmatprep.subr.mxu0 0.0
    %538 = vmatpush1.msra.mxu0 %v490
    %539 = vmatprep.subr.mxu0 0.0
    %540 = vmatpush1.msra.mxu0 %v491
    %541 = vmatprep.subr.mxu0 0.0
    %542 = vmatpush1.msra.mxu0 0.0
    %543 = vmatprep.subr.mxu0 0.0
    %544 = vmatpush1.msra.mxu0 0.0
    %545 = vmatprep.subr.mxu0 0.0
    %546 = vmatpush1.msra.mxu0 0.0
    %547 = vmatprep.subr.mxu0 0.0
    %548 = vmatpush1.msra.mxu0 0.0
    %549 = vmatprep.subr.mxu0 0.0
    %550 = vmatpush1.msra.mxu0 0.0
    %551 = vmatprep.subr.mxu0 0.0
    %552 = vmatpush1.msra.mxu0 0.0
    %553 = vmatprep.subr.mxu0 0.0
    %554 = vmatpush1.msra.mxu0 0.0
    %555 = vmatprep.subr.mxu0 0.0
    %556 = vmatpush1.msra.mxu0 0.0
    %557 = vmatprep.subr.mxu0 0.0
    %558 = vmatpush1.msra.mxu0 0.0
    %559 = vmatprep.subr.mxu0 0.0
    %560 = vmatpush1.msra.mxu0 0.0
    %561 = vmatprep.subr.mxu0 0.0
    %562 = vmatpush1.msra.mxu0 0.0
    %563 = vmatprep.subr.mxu0 0.0
    %564 = vmatpush1.msra.mxu0 0.0
    %565 = vmatprep.subr.mxu0 0.0
    %566 = vmatpush1.msra.mxu0 0.0
    %567 = vmatprep.subr.mxu0 0.0
    %568 = vmatpush1.msra.mxu0 0.0
    %569 = vmatprep.subr.mxu0 0.0
    %570 = vmatpush1.msra.mxu0 0.0
    %571 = vmatprep.subr.mxu0 0.0
    %572 = vmatpush1.msra.mxu0 0.0
    %573 = vmatprep.subr.mxu0 0.0
    %574 = vmatpush1.msra.mxu0 0.0
    %575 = vmatprep.subr.mxu0 0.0
    %576 = vmatpush1.msra.mxu0 0.0
    %577 = vmatprep.subr.mxu0 0.0
    %578 = vmatpush1.msra.mxu0 0.0
    %579 = vmatprep.subr.mxu0 0.0
    %580 = vmatpush1.msra.mxu0 0.0
    %581 = vmatprep.subr.mxu0 0.0
    %582 = vmatpush1.msra.mxu0 0.0
    %583 = vmatprep.subr.mxu0 0.0
    %584 = vmatpush1.msra.mxu0 0.0
    %585 = vmatprep.subr.mxu0 0.0
    %586 = vmatpush1.msra.mxu0 0.0
    %587 = vmatprep.subr.mxu0 0.0
    %588 = vmatpush1.msra.mxu0 0.0
    %589 = vmatprep.subr.mxu0 0.0
    %590 = vmatpush1.msra.mxu0 0.0
    %591 = vmatprep.subr.mxu0 0.0
    %592 = vmatpush1.msra.mxu0 0.0
    %593 = vmatprep.subr.mxu0 0.0
    %594 = vmatpush1.msra.mxu0 0.0
    %595 = vmatprep.subr.mxu0 0.0
    %596 = vmatpush1.msra.mxu0 0.0
    %597 = vmatprep.subr.mxu0 0.0
    %598 = vmatpush1.msra.mxu0 0.0
    %599 = vmatprep.subr.mxu0 0.0
    %600 = vmatpush1.msra.mxu0 0.0
    %601 = vmatprep.mubr.f32.mxu0 0.0
    %602 = vmatmul.mubr.f32.gmra.mrb[0].mxu0 %v535
    %v603 = vpop.f32.mrb[0].mxu0
    %v604 = vadd.f32 %v531, %v603
    %v605 = vpop.f32.mrb[0].mxu0
    %606 = vdwg.mxu0
    %607 = vadd.xlane.f32.xlu0 %v604
    %v608 = vpop.xlane.xlu0 %607
    %v609 = vmul.f32 %v608, %v314
    %v610 = vsub.f32 %v604, %v609
    %v611 = vmul.f32 %v610, %v610
    %612 = vadd.xlane.f32.xlu0 %v611
    %v613 = vpop.xlane.xlu0 %612
    %v614 = vmul.f32 %v613, %v314
    %v615 = vadd.f32 %v614, 1e-05
    %v616 = vrsqrt.pop %v615
    %v617 = vmul.f32 %v610, %v616
    %v618 = vmax.f32 %v617, 0.0
    %v620 = vlaneseq
    %v621 = vshrl.u32 %v620, 7
    %v622 = vsub.s32 0, %v621
    %v623 = vrot.slane %v509, %v622
    %625 = vmatprep.subr.mxu0 0.0
    %626 = vmatpush1.msra.mxu0 %v493
    %627 = vmatprep.subr.mxu0 0.0
    %628 = vmatpush1.msra.mxu0 %v494
    %629 = vmatprep.subr.mxu0 0.0
    %630 = vmatpush1.msra.mxu0 %v495
    %631 = vmatprep.subr.mxu0 0.0
    %632 = vmatpush1.msra.mxu0 %v496
    %633 = vmatprep.subr.mxu0 0.0
    %634 = vmatpush1.msra.mxu0 %v497
    %635 = vmatprep.subr.mxu0 0.0
    %636 = vmatpush1.msra.mxu0 %v498
    %637 = vmatprep.subr.mxu0 0.0
    %638 = vmatpush1.msra.mxu0 %v499
    %639 = vmatprep.subr.mxu0 0.0
    %640 = vmatpush1.msra.mxu0 %v500
    %641 = vmatprep.subr.mxu0 0.0
    %642 = vmatpush1.msra.mxu0 %v501
    %643 = vmatprep.subr.mxu0 0.0
    %644 = vmatpush1.msra.mxu0 %v502
    %645 = vmatprep.subr.mxu0 0.0
    %646 = vmatpush1.msra.mxu0 %v503
    %647 = vmatprep.subr.mxu0 0.0
    %648 = vmatpush1.msra.mxu0 %v504
    %649 = vmatprep.subr.mxu0 0.0
    %650 = vmatpush1.msra.mxu0 %v505
    %651 = vmatprep.subr.mxu0 0.0
    %652 = vmatpush1.msra.mxu0 %v506
    %653 = vmatprep.subr.mxu0 0.0
    %654 = vmatpush1.msra.mxu0 %v507
    %655 = vmatprep.subr.mxu0 0.0
    %656 = vmatpush1.msra.mxu0 %v508
    %657 = vmatprep.subr.mxu0 0.0
    %658 = vmatpush1.msra.mxu0 0.0
    %659 = vmatprep.subr.mxu0 0.0
    %660 = vmatpush1.msra.mxu0 0.0
    %661 = vmatprep.subr.mxu0 0.0
    %662 = vmatpush1.msra.mxu0 0.0
    %663 = vmatprep.subr.mxu0 0.0
    %664 = vmatpush1.msra.mxu0 0.0
    %665 = vmatprep.subr.mxu0 0.0
    %666 = vmatpush1.msra.mxu0 0.0
    %667 = vmatprep.subr.mxu0 0.0
    %668 = vmatpush1.msra.mxu0 0.0
    %669 = vmatprep.subr.mxu0 0.0
    %670 = vmatpush1.msra.mxu0 0.0
    %671 = vmatprep.subr.mxu0 0.0
    %672 = vmatpush1.msra.mxu0 0.0
    %673 = vmatprep.subr.mxu0 0.0
    %674 = vmatpush1.msra.mxu0 0.0
    %675 = vmatprep.subr.mxu0 0.0
    %676 = vmatpush1.msra.mxu0 0.0
    %677 = vmatprep.subr.mxu0 0.0
    %678 = vmatpush1.msra.mxu0 0.0
    %679 = vmatprep.subr.mxu0 0.0
    %680 = vmatpush1.msra.mxu0 0.0
    %681 = vmatprep.subr.mxu0 0.0
    %682 = vmatpush1.msra.mxu0 0.0
    %683 = vmatprep.subr.mxu0 0.0
    %684 = vmatpush1.msra.mxu0 0.0
    %685 = vmatprep.subr.mxu0 0.0
    %686 = vmatpush1.msra.mxu0 0.0
    %687 = vmatprep.subr.mxu0 0.0
    %688 = vmatpush1.msra.mxu0 0.0
    %689 = vmatprep.mubr.f32.mxu0 0.0
    %690 = vmatmul.mubr.f32.gmra.mrb[0].mxu0 %v618
    %v691 = vpop.f32.mrb[0].mxu0
    %v692 = vadd.f32 %v623, %v691
    %v693 = vpop.f32.mrb[0].mxu0
    %694 = vdwg.mxu0
    %695 = vadd.xlane.f32.xlu0 %v692
    %v696 = vpop.xlane.xlu0 %695
    %v697 = vmul.f32 %v696, %v314
    %v698 = vsub.f32 %v692, %v697
    %v699 = vmul.f32 %v698, %v698
    %700 = vadd.xlane.f32.xlu0 %v699
    %v701 = vpop.xlane.xlu0 %700
    %v702 = vmul.f32 %v701, %v314
    %v703 = vadd.f32 %v702, 1e-05
    %v704 = vrsqrt.pop %v703
    %v705 = vmul.f32 %v698, %v704
    %v706 = vmax.f32 %v705, 0.0
    %v708 = vlaneseq
    %v709 = vshrl.u32 %v708, 7
    %v710 = vsub.s32 0, %v709
    %v711 = vrot.slane %v526, %v710
    %713 = vmatprep.subr.mxu0 0.0
    %714 = vmatpush1.msra.mxu0 %v510
    %715 = vmatprep.subr.mxu0 0.0
    %716 = vmatpush1.msra.mxu0 %v511
    %717 = vmatprep.subr.mxu0 0.0
    %718 = vmatpush1.msra.mxu0 %v512
    %719 = vmatprep.subr.mxu0 0.0
    %720 = vmatpush1.msra.mxu0 %v513
    %721 = vmatprep.subr.mxu0 0.0
    %722 = vmatpush1.msra.mxu0 %v514
    %723 = vmatprep.subr.mxu0 0.0
    %724 = vmatpush1.msra.mxu0 %v515
    %725 = vmatprep.subr.mxu0 0.0
    %726 = vmatpush1.msra.mxu0 %v516
    %727 = vmatprep.subr.mxu0 0.0
    %728 = vmatpush1.msra.mxu0 %v517
    %729 = vmatprep.subr.mxu0 0.0
    %730 = vmatpush1.msra.mxu0 %v518
    %731 = vmatprep.subr.mxu0 0.0
    %732 = vmatpush1.msra.mxu0 %v519
    %733 = vmatprep.subr.mxu0 0.0
    %734 = vmatpush1.msra.mxu0 %v520
    %735 = vmatprep.subr.mxu0 0.0
    %736 = vmatpush1.msra.mxu0 %v521
    %737 = vmatprep.subr.mxu0 0.0
    %738 = vmatpush1.msra.mxu0 %v522
    %739 = vmatprep.subr.mxu0 0.0
    %740 = vmatpush1.msra.mxu0 %v523
    %741 = vmatprep.subr.mxu0 0.0
    %742 = vmatpush1.msra.mxu0 %v524
    %743 = vmatprep.subr.mxu0 0.0
    %744 = vmatpush1.msra.mxu0 %v525
    %745 = vmatprep.subr.mxu0 0.0
    %746 = vmatpush1.msra.mxu0 0.0
    %747 = vmatprep.subr.mxu0 0.0
    %748 = vmatpush1.msra.mxu0 0.0
    %749 = vmatprep.subr.mxu0 0.0
    %750 = vmatpush1.msra.mxu0 0.0
    %751 = vmatprep.subr.mxu0 0.0
    %752 = vmatpush1.msra.mxu0 0.0
    %753 = vmatprep.subr.mxu0 0.0
    %754 = vmatpush1.msra.mxu0 0.0
    %755 = vmatprep.subr.mxu0 0.0
    %756 = vmatpush1.msra.mxu0 0.0
    %757 = vmatprep.subr.mxu0 0.0
    %758 = vmatpush1.msra.mxu0 0.0
    %759 = vmatprep.subr.mxu0 0.0
    %760 = vmatpush1.msra.mxu0 0.0
    %761 = vmatprep.subr.mxu0 0.0
    %762 = vmatpush1.msra.mxu0 0.0
    %763 = vmatprep.subr.mxu0 0.0
    %764 = vmatpush1.msra.mxu0 0.0
    %765 = vmatprep.subr.mxu0 0.0
    %766 = vmatpush1.msra.mxu0 0.0
    %767 = vmatprep.subr.mxu0 0.0
    %768 = vmatpush1.msra.mxu0 0.0
    %769 = vmatprep.subr.mxu0 0.0
    %770 = vmatpush1.msra.mxu0 0.0
    %771 = vmatprep.subr.mxu0 0.0
    %772 = vmatpush1.msra.mxu0 0.0
    %773 = vmatprep.subr.mxu0 0.0
    %774 = vmatpush1.msra.mxu0 0.0
    %775 = vmatprep.subr.mxu0 0.0
    %776 = vmatpush1.msra.mxu0 0.0
    %777 = vmatprep.mubr.f32.mxu0 0.0
    %778 = vmatmul.mubr.f32.gmra.mrb[0].mxu0 %v706
    %v779 = vpop.f32.mrb[0].mxu0
    %v780 = vadd.f32 %v711, %v779
    %v781 = vpop.f32.mrb[0].mxu0
    %782 = vdwg.mxu0
    %v783 = vadd.f32 %v486, %v780
    %v784 = vld [vmem:[%s14] sm:$0xff]
    %v785 = vld [vmem:[%s14 + $0x8] sm:$0xff]
    %v786 = vld [vmem:[%s14 + $0x10] sm:$0xff]
    %v787 = vld [vmem:[%s14 + $0x18] sm:$0xff]
    %v788 = vld [vmem:[%s15] sm:$0x1]
    %v789 = vld [vmem:[#allocation13] sm:$0xff]
    %v790 = vld [vmem:[#allocation13 + $0x8] sm:$0xff]
    %v791 = vld [vmem:[#allocation13 + $0x10] sm:$0xff]
    %v792 = vld [vmem:[#allocation13 + $0x18] sm:$0xff]
    %v793 = vld [vmem:[#allocation13 + $0x20] sm:$0xff]
    %v794 = vld [vmem:[#allocation13 + $0x28] sm:$0xff]
    %v795 = vld [vmem:[#allocation13 + $0x30] sm:$0xff]
    %v796 = vld [vmem:[#allocation13 + $0x38] sm:$0xff]
    %v797 = vld [vmem:[#allocation13 + $0x40] sm:$0xff]
    %v798 = vld [vmem:[#allocation13 + $0x48] sm:$0xff]
    %v799 = vld [vmem:[#allocation13 + $0x50] sm:$0xff]
    %v800 = vld [vmem:[#allocation13 + $0x58] sm:$0xff]
    %v801 = vld [vmem:[#allocation13 + $0x60] sm:$0xff]
    %v802 = vld [vmem:[#allocation13 + $0x68] sm:$0xff]
    %v803 = vld [vmem:[#allocation13 + $0x70] sm:$0xff]
    %v804 = vld [vmem:[#allocation13 + $0x78] sm:$0xff]
    %v805 = vld [vmem:[%s17] sm:$0x1]
    %v806 = vld [vmem:[#allocation14] sm:$0xff]
    %v807 = vld [vmem:[#allocation14 + $0x8] sm:$0xff]
    %v808 = vld [vmem:[#allocation14 + $0x10] sm:$0xff]
    %v809 = vld [vmem:[#allocation14 + $0x18] sm:$0xff]
    %v810 = vld [vmem:[#allocation14 + $0x20] sm:$0xff]
    %v811 = vld [vmem:[#allocation14 + $0x28] sm:$0xff]
    %v812 = vld [vmem:[#allocation14 + $0x30] sm:$0xff]
    %v813 = vld [vmem:[#allocation14 + $0x38] sm:$0xff]
    %v814 = vld [vmem:[#allocation14 + $0x40] sm:$0xff]
    %v815 = vld [vmem:[#allocation14 + $0x48] sm:$0xff]
    %v816 = vld [vmem:[#allocation14 + $0x50] sm:$0xff]
    %v817 = vld [vmem:[#allocation14 + $0x58] sm:$0xff]
    %v818 = vld [vmem:[#allocation14 + $0x60] sm:$0xff]
    %v819 = vld [vmem:[#allocation14 + $0x68] sm:$0xff]
    %v820 = vld [vmem:[#allocation14 + $0x70] sm:$0xff]
    %v821 = vld [vmem:[#allocation14 + $0x78] sm:$0xff]
    %v822 = vld [vmem:[#allocation14 + $0x80] sm:$0xff]
    %v823 = vld [vmem:[#allocation14 + $0x88] sm:$0xff]
    %v824 = vld [vmem:[#allocation14 + $0x90] sm:$0xff]
    %v825 = vld [vmem:[#allocation14 + $0x98] sm:$0xff]
    %v826 = vld [vmem:[#allocation14 + $0xa0] sm:$0xff]
    %v827 = vld [vmem:[#allocation14 + $0xa8] sm:$0xff]
    %v828 = vld [vmem:[#allocation14 + $0xb0] sm:$0xff]
    %v829 = vld [vmem:[#allocation14 + $0xb8] sm:$0xff]
    %v830 = vld [vmem:[#allocation14 + $0xc0] sm:$0xff]
    %v831 = vld [vmem:[#allocation14 + $0xc8] sm:$0xff]
    %v832 = vld [vmem:[#allocation14 + $0xd0] sm:$0xff]
    %v833 = vld [vmem:[#allocation14 + $0xd8] sm:$0xff]
    %v834 = vld [vmem:[#allocation14 + $0xe0] sm:$0xff]
    %v835 = vld [vmem:[#allocation14 + $0xe8] sm:$0xff]
    %v836 = vld [vmem:[#allocation14 + $0xf0] sm:$0xff]
    %v837 = vld [vmem:[#allocation14 + $0xf8] sm:$0xff]
    %v838 = vld [vmem:[%s19] sm:$0x3]
    %v840 = vlaneseq
    %v841 = vshrl.u32 %v840, 7
    %v842 = vsub.s32 0, %v841
    %v843 = vrot.slane %v788, %v842
    %vm845 = vcmask 261120
    %v847 = vsel %vm845, %v783, 0
    %849 = vmatprep.subr.mxu0 0.0
    %850 = vmatpush1.msra.mxu0 %v784
    %851 = vmatprep.subr.mxu0 0.0
    %852 = vmatpush1.msra.mxu0 %v785
    %853 = vmatprep.subr.mxu0 0.0
    %854 = vmatpush1.msra.mxu0 %v786
    %855 = vmatprep.subr.mxu0 0.0
    %856 = vmatpush1.msra.mxu0 %v787
    %857 = vmatprep.subr.mxu0 0.0
    %858 = vmatpush1.msra.mxu0 0.0
    %859 = vmatprep.subr.mxu0 0.0
    %860 = vmatpush1.msra.mxu0 0.0
    %861 = vmatprep.subr.mxu0 0.0
    %862 = vmatpush1.msra.mxu0 0.0
    %863 = vmatprep.subr.mxu0 0.0
    %864 = vmatpush1.msra.mxu0 0.0
    %865 = vmatprep.subr.mxu0 0.0
    %866 = vmatpush1.msra.mxu0 0.0
    %867 = vmatprep.subr.mxu0 0.0
    %868 = vmatpush1.msra.mxu0 0.0
    %869 = vmatprep.subr.mxu0 0.0
    %870 = vmatpush1.msra.mxu0 0.0
    %871 = vmatprep.subr.mxu0 0.0
    %872 = vmatpush1.msra.mxu0 0.0
    %873 = vmatprep.subr.mxu0 0.0
    %874 = vmatpush1.msra.mxu0 0.0
    %875 = vmatprep.subr.mxu0 0.0
    %876 = vmatpush1.msra.mxu0 0.0
    %877 = vmatprep.subr.mxu0 0.0
    %878 = vmatpush1.msra.mxu0 0.0
    %879 = vmatprep.subr.mxu0 0.0
    %880 = vmatpush1.msra.mxu0 0.0
    %881 = vmatprep.subr.mxu0 0.0
    %882 = vmatpush1.msra.mxu0 0.0
    %883 = vmatprep.subr.mxu0 0.0
    %884 = vmatpush1.msra.mxu0 0.0
    %885 = vmatprep.subr.mxu0 0.0
    %886 = vmatpush1.msra.mxu0 0.0
    %887 = vmatprep.subr.mxu0 0.0
    %888 = vmatpush1.msra.mxu0 0.0
    %889 = vmatprep.subr.mxu0 0.0
    %890 = vmatpush1.msra.mxu0 0.0
    %891 = vmatprep.subr.mxu0 0.0
    %892 = vmatpush1.msra.mxu0 0.0
    %893 = vmatprep.subr.mxu0 0.0
    %894 = vmatpush1.msra.mxu0 0.0
    %895 = vmatprep.subr.mxu0 0.0
    %896 = vmatpush1.msra.mxu0 0.0
    %897 = vmatprep.subr.mxu0 0.0
    %898 = vmatpush1.msra.mxu0 0.0
    %899 = vmatprep.subr.mxu0 0.0
    %900 = vmatpush1.msra.mxu0 0.0
    %901 = vmatprep.subr.mxu0 0.0
    %902 = vmatpush1.msra.mxu0 0.0
    %903 = vmatprep.subr.mxu0 0.0
    %904 = vmatpush1.msra.mxu0 0.0
    %905 = vmatprep.subr.mxu0 0.0
    %906 = vmatpush1.msra.mxu0 0.0
    %907 = vmatprep.subr.mxu0 0.0
    %908 = vmatpush1.msra.mxu0 0.0
    %909 = vmatprep.subr.mxu0 0.0
    %910 = vmatpush1.msra.mxu0 0.0
    %911 = vmatprep.subr.mxu0 0.0
    %912 = vmatpush1.msra.mxu0 0.0
    %913 = vmatprep.mubr.f32.mxu0 0.0
    %914 = vmatmul.mubr.f32.gmra.mrb[0].mxu0 %v847
    %v915 = vpop.f32.mrb[0].mxu0
    %v916 = vadd.f32 %v843, %v915
    %v917 = vpop.f32.mrb[0].mxu0
    %918 = vdwg.mxu0
    %919 = vadd.xlane.f32.xlu0 %v916
    %v920 = vpop.xlane.xlu0 %919
    %v921 = vmul.f32 %v920, %v314
    %v922 = vsub.f32 %v916, %v921
    %v923 = vmul.f32 %v922, %v922
    %924 = vadd.xlane.f32.xlu0 %v923
    %v925 = vpop.xlane.xlu0 %924
    %v926 = vmul.f32 %v925, %v314
    %v927 = vadd.f32 %v926, 1e-05
    %v928 = vrsqrt.pop %v927
    %v929 = vmul.f32 %v922, %v928
    %v930 = vmax.f32 %v929, 0.0
    %v932 = vlaneseq
    %v933 = vshrl.u32 %v932, 7
    %v934 = vsub.s32 0, %v933
    %v935 = vrot.slane %v805, %v934
    %937 = vmatprep.subr.mxu0 0.0
    %938 = vmatpush1.msra.mxu0 %v789
    %939 = vmatprep.subr.mxu0 0.0
    %940 = vmatpush1.msra.mxu0 %v790
    %941 = vmatprep.subr.mxu0 0.0
    %942 = vmatpush1.msra.mxu0 %v791
    %943 = vmatprep.subr.mxu0 0.0
    %944 = vmatpush1.msra.mxu0 %v792
    %945 = vmatprep.subr.mxu0 0.0
    %946 = vmatpush1.msra.mxu0 %v793
    %947 = vmatprep.subr.mxu0 0.0
    %948 = vmatpush1.msra.mxu0 %v794
    %949 = vmatprep.subr.mxu0 0.0
    %950 = vmatpush1.msra.mxu0 %v795
    %951 = vmatprep.subr.mxu0 0.0
    %952 = vmatpush1.msra.mxu0 %v796
    %953 = vmatprep.subr.mxu0 0.0
    %954 = vmatpush1.msra.mxu0 %v797
    %955 = vmatprep.subr.mxu0 0.0
    %956 = vmatpush1.msra.mxu0 %v798
    %957 = vmatprep.subr.mxu0 0.0
    %958 = vmatpush1.msra.mxu0 %v799
    %959 = vmatprep.subr.mxu0 0.0
    %960 = vmatpush1.msra.mxu0 %v800
    %961 = vmatprep.subr.mxu0 0.0
    %962 = vmatpush1.msra.mxu0 %v801
    %963 = vmatprep.subr.mxu0 0.0
    %964 = vmatpush1.msra.mxu0 %v802
    %965 = vmatprep.subr.mxu0 0.0
    %966 = vmatpush1.msra.mxu0 %v803
    %967 = vmatprep.subr.mxu0 0.0
    %968 = vmatpush1.msra.mxu0 %v804
    %969 = vmatprep.subr.mxu0 0.0
    %970 = vmatpush1.msra.mxu0 0.0
    %971 = vmatprep.subr.mxu0 0.0
    %972 = vmatpush1.msra.mxu0 0.0
    %973 = vmatprep.subr.mxu0 0.0
    %974 = vmatpush1.msra.mxu0 0.0
    %975 = vmatprep.subr.mxu0 0.0
    %976 = vmatpush1.msra.mxu0 0.0
    %977 = vmatprep.subr.mxu0 0.0
    %978 = vmatpush1.msra.mxu0 0.0
    %979 = vmatprep.subr.mxu0 0.0
    %980 = vmatpush1.msra.mxu0 0.0
    %981 = vmatprep.subr.mxu0 0.0
    %982 = vmatpush1.msra.mxu0 0.0
    %983 = vmatprep.subr.mxu0 0.0
    %984 = vmatpush1.msra.mxu0 0.0
    %985 = vmatprep.subr.mxu0 0.0
    %986 = vmatpush1.msra.mxu0 0.0
    %987 = vmatprep.subr.mxu0 0.0
    %988 = vmatpush1.msra.mxu0 0.0
    %989 = vmatprep.subr.mxu0 0.0
    %990 = vmatpush1.msra.mxu0 0.0
    %991 = vmatprep.subr.mxu0 0.0
    %992 = vmatpush1.msra.mxu0 0.0
    %993 = vmatprep.subr.mxu0 0.0
    %994 = vmatpush1.msra.mxu0 0.0
    %995 = vmatprep.subr.mxu0 0.0
    %996 = vmatpush1.msra.mxu0 0.0
    %997 = vmatprep.subr.mxu0 0.0
    %998 = vmatpush1.msra.mxu0 0.0
    %999 = vmatprep.subr.mxu0 0.0
    %1000 = vmatpush1.msra.mxu0 0.0
    %1001 = vmatprep.mubr.f32.mxu0 0.0
    %1002 = vmatmul.mubr.f32.gmra.mrb[0].mxu0 %v930
    %v1003 = vpop.f32.mrb[0].mxu0
    %v1004 = vadd.f32 %v935, %v1003
    %v1005 = vpop.f32.mrb[0].mxu0
    %1006 = vdwg.mxu0
    %1007 = vadd.xlane.f32.xlu0 %v1004
    %v1008 = vpop.xlane.xlu0 %1007
    %v1009 = vmul.f32 %v1008, %v314
    %v1010 = vsub.f32 %v1004, %v1009
    %v1011 = vmul.f32 %v1010, %v1010
    %1012 = vadd.xlane.f32.xlu0 %v1011
    %v1013 = vpop.xlane.xlu0 %1012
    %v1014 = vmul.f32 %v1013, %v314
    %v1015 = vadd.f32 %v1014, 1e-05
    %v1016 = vrsqrt.pop %v1015
    %v1017 = vmul.f32 %v1010, %v1016
    %v1018 = vmax.f32 %v1017, 0.0
    %v1020 = vlaneseq
    %v1021 = vshrl.u32 %v1020, 7
    %v1022 = vsub.s32 0, %v1021
    %v1023 = vrot.slane %v838, %v1022
    %v1024 = vlaneseq
    %v1025 = vshrl.u32 %v1024, 7
    %v1026 = vsub.s32 1, %v1025
    %v1027 = vrot.slane %v838, %v1026
    %1030 = vmatprep.subr.mxu0 %v807
    %1031 = vmatpush1.msra.mxu0 %v806
    %1032 = vmatprep.subr.mxu0 %v809
    %1033 = vmatpush1.msra.mxu0 %v808
    %1034 = vmatprep.subr.mxu0 %v811
    %1035 = vmatpush1.msra.mxu0 %v810
    %1036 = vmatprep.subr.mxu0 %v813
    %1037 = vmatpush1.msra.mxu0 %v812
    %1038 = vmatprep.subr.mxu0 %v815
    %1039 = vmatpush1.msra.mxu0 %v814
    %1040 = vmatprep.subr.mxu0 %v817
    %1041 = vmatpush1.msra.mxu0 %v816
    %1042 = vmatprep.subr.mxu0 %v819
    %1043 = vmatpush1.msra.mxu0 %v818
    %1044 = vmatprep.subr.mxu0 %v821
    %1045 = vmatpush1.msra.mxu0 %v820
    %1046 = vmatprep.subr.mxu0 %v823
    %1047 = vmatpush1.msra.mxu0 %v822
    %1048 = vmatprep.subr.mxu0 %v825
    %1049 = vmatpush1.msra.mxu0 %v824
    %1050 = vmatprep.subr.mxu0 %v827
    %1051 = vmatpush1.msra.mxu0 %v826
    %1052 = vmatprep.subr.mxu0 %v829
    %1053 = vmatpush1.msra.mxu0 %v828
    %1054 = vmatprep.subr.mxu0 %v831
    %1055 = vmatpush1.msra.mxu0 %v830
    %1056 = vmatprep.subr.mxu0 %v833
    %1057 = vmatpush1.msra.mxu0 %v832
    %1058 = vmatprep.subr.mxu0 %v835
    %1059 = vmatpush1.msra.mxu0 %v834
    %1060 = vmatprep.subr.mxu0 %v837
    %1061 = vmatpush1.msra.mxu0 %v836
    %1062 = vmatprep.subr.mxu0 0.0
    %1063 = vmatpush1.msra.mxu0 0.0
    %1064 = vmatprep.subr.mxu0 0.0
    %1065 = vmatpush1.msra.mxu0 0.0
    %1066 = vmatprep.subr.mxu0 0.0
    %1067 = vmatpush1.msra.mxu0 0.0
    %1068 = vmatprep.subr.mxu0 0.0
    %1069 = vmatpush1.msra.mxu0 0.0
    %1070 = vmatprep.subr.mxu0 0.0
    %1071 = vmatpush1.msra.mxu0 0.0
    %1072 = vmatprep.subr.mxu0 0.0
    %1073 = vmatpush1.msra.mxu0 0.0
    %1074 = vmatprep.subr.mxu0 0.0
    %1075 = vmatpush1.msra.mxu0 0.0
    %1076 = vmatprep.subr.mxu0 0.0
    %1077 = vmatpush1.msra.mxu0 0.0
    %1078 = vmatprep.subr.mxu0 0.0
    %1079 = vmatpush1.msra.mxu0 0.0
    %1080 = vmatprep.subr.mxu0 0.0
    %1081 = vmatpush1.msra.mxu0 0.0
    %1082 = vmatprep.subr.mxu0 0.0
    %1083 = vmatpush1.msra.mxu0 0.0
    %1084 = vmatprep.subr.mxu0 0.0
    %1085 = vmatpush1.msra.mxu0 0.0
    %1086 = vmatprep.subr.mxu0 0.0
    %1087 = vmatpush1.msra.mxu0 0.0
    %1088 = vmatprep.subr.mxu0 0.0
    %1089 = vmatpush1.msra.mxu0 0.0
    %1090 = vmatprep.subr.mxu0 0.0
    %1091 = vmatpush1.msra.mxu0 0.0
    %1092 = vmatprep.subr.mxu0 0.0
    %1093 = vmatpush1.msra.mxu0 0.0
    %1094 = vmatprep.mubr.f32.mxu0 0.0
    %1095 = vmatmul.mubr.f32.gmra.mrb[0].mxu0 %v1018
    %v1096 = vpop.f32.mrb[0].mxu0
    %v1097 = vadd.f32 %v1023, %v1096
    %v1098 = vpop.f32.mrb[0].mxu0
    %v1099 = vadd.f32 %v1027, %v1098
    %1100 = vdwg.mxu0
    %v1101 = vmax.f32 %v1097, 0.0
    %v1102 = vmax.f32 %v1099, 0.0
    %v1103 = vand.u32 2147483647, %v1097
    %v1104 = vand.u32 2147483647, %v1099
    %v1105 = vsub.f32 0.0, %v1103
    %v1106 = vsub.f32 0.0, %v1104
    %v1107 = vmul.f32 %v1105, 1.442695
    %v1108 = vpow.pop %v1107
    %v1109 = vmul.f32 %v1106, 1.442695
    %v1110 = vpow.pop %v1109
    %v1111 = vadd.f32 %v1108, 1.0
    %v1112 = vlog2.pop %v1111
    %v1113 = vmul.f32 %v1112, 0.6931472
    %v1114 = vmul.f32 -0.5, %v1108
    %v1115 = vadd.f32 %v1114, 1.0
    %v1116 = vmul.f32 %v1115, %v1108
    %v1117 = vand.u32 2147483647, %v1108
    %vm1118 = vcmp.lt.f32.partialorder %v1117, 0.0004427343
    %v1119 = vsel %vm1118, %v1116, %v1113
    %v1120 = vadd.f32 %v1110, 1.0
    %v1121 = vlog2.pop %v1120
    %v1122 = vmul.f32 %v1121, 0.6931472
    %v1123 = vmul.f32 -0.5, %v1110
    %v1124 = vadd.f32 %v1123, 1.0
    %v1125 = vmul.f32 %v1124, %v1110
    %v1126 = vand.u32 2147483647, %v1110
    %vm1127 = vcmp.lt.f32.partialorder %v1126, 0.0004427343
    %v1128 = vsel %vm1127, %v1125, %v1122
    %v1129 = vadd.f32 %v1101, %v1119
    %v1130 = vadd.f32 %v1102, %v1128
    %1131 = vst [vmem:[#allocation16] sm:$0xff] %v1129
    %1132 = vst [vmem:[#allocation16 + $0x8] sm:$0xff] %v1130
    // Predicated region
    $region114: #{tpu_custom_call.1} parent=1 // pred_check
      _
    $region115: #{tpu_custom_call.1} parent=1 // pred_check_branch
      %1134 = sbr.rel (0) target = $region117
    $region116: #{tpu_custom_call.1} parent=1 // pred_region
      %s1136 = ssub.s32 256, 256
      %1137 = vsyncadd [#allocation4], %s1136
      %s1139 = sshll.u32 [#allocation16], 4
      %s1140 = int_to_ptr.vmem [resolvable:$true] %s1139
      %1142 = dma.vmem_to_hbm [thread:$0]  %s1140, 256, %s20, [#allocation4]
    $region117: #{tpu_custom_call.1} parent=1 // pred_fallthru
      _
    // Predicated region
    $region118: #{tpu_custom_call.1} parent=1 // pred_check
      _
    $region119: #{tpu_custom_call.1} parent=1 // pred_check_branch
      %1144 = sbr.rel (0) target = $region121
    $region120: #{tpu_custom_call.1} parent=1 // pred_region
      %1145 = dma.done [#allocation4], 256
    $region121: #{tpu_custom_call.1} parent=1 // pred_fallthru
      _
    %1146 = vsyncpa [#allocation3], 1
    %1147 = vsyncpa [#allocation6], 1
    %1148 = vsyncpa [#allocation9], 1
    %1149 = vsyncpa [#allocation12], 1
    %1150 = vsyncpa [#allocation15], 1
    %1151 = vsyncpa [#allocation4], 1

</llo_original>
